<compile_context>
chip_gen: v7x
topology: tpu7x:2x2x1
jax: 0.10.0
libtpu: 0.0.40
codegen_flags: <defaults>
</compile_context>

<pallas_src>
import math

import jax
import jax.numpy as jnp
from jax import lax
from jax.experimental import pallas as pl
from jax.experimental.pallas import tpu as pltpu

# ----------------------------- configuration -----------------------------
IN_SIZE = 16      # F
OUT_SIZE = 32     # out_size
HEAD_NUM = 4
KEY_SIZE = OUT_SIZE // HEAD_NUM   # = val_size
BATCH = 2
SEQ_LEN = 8       # L
LN_EPS = 1e-5
MIN_VALUE = float(jnp.finfo(jnp.float32).min) / 2.0   # torch.finfo(f32).min / 2


# ------------------------------ Pallas kernel -----------------------------
def _self_attn_kernel(mask_ref, x_ref, wf_ref, bf_ref, wo_ref, bo_ref,
                      gamma_ref, beta_ref, out_ref, atten_ref):
    bb = mask_ref.shape[0]          # batches folded into this grid step
    L = mask_ref.shape[2]
    OUT = wo_ref.shape[0]
    H = atten_ref.shape[1] // L
    K = OUT // H

    # Load weights once (hoisted out of all loops).
    wo = wo_ref[...]                # (OUT, OUT)
    bo = bo_ref[...]                # (1, OUT)
    gamma = gamma_ref[...]          # (1, OUT)
    beta = beta_ref[...]            # (1, OUT)

    # Single lane-dense projection for all bb*L rows:
    #   proj = x @ [Wq/sqrt(K) | Wk | Wv | S_bypass] + [bq/sqrt(K) | bk | bv | 0]
    # shape (bb*L, 4*OUT) = (bb*L, 128) -> one full-width MXU issue.
    proj = jnp.dot(x_ref[...], wf_ref[...],
                   preferred_element_type=jnp.float32) + bf_ref[...]

    for bi in range(bb):
        r0 = bi * L

        # Additive mask bias, computed once per batch (hoisted out of head loop).
        # Equivalent to masked_fill for any row with >=1 unmasked key (masked
        # probabilities underflow to exactly 0 either way); a fully-masked row
        # yields a softmax over the raw scores instead of a uniform row.
        mask_b = mask_ref[bi]                              # (1, L)
        bias = jnp.where(mask_b == 0.0,
                         jnp.float32(MIN_VALUE), jnp.float32(0.0))

        acc = jnp.zeros((L, OUT), jnp.float32)
        for h in range(H):
            c0 = h * K
            qh = proj[r0:r0 + L, c0:c0 + K]                        # pre-scaled q
            kh = proj[r0:r0 + L, OUT + c0:OUT + c0 + K]
            vh = proj[r0:r0 + L, 2 * OUT + c0:2 * OUT + c0 + K]

            # q @ k^T (scale already folded into Wq) + mask bias
            score = lax.dot_general(
                qh, kh, dimension_numbers=(((1,), (1,)), ((), ())),
                preferred_element_type=jnp.float32) + bias

            # softmax over keys; reciprocal goes to the (otherwise idle) EUP
            m = jnp.max(score, axis=-1, keepdims=True)
            e = jnp.exp(score - m)
            att = e * pl.reciprocal(jnp.sum(e, axis=-1, keepdims=True),
                                    approx=True)

            # lane-packed attention output: head h occupies lanes [h*L, (h+1)*L)
            atten_ref[r0:r0 + L, h * L:(h + 1) * L] = att

            # distribute Wo over heads -> no concatenate of head values
            hv = jnp.dot(att, vh, preferred_element_type=jnp.float32)  # (L, K)
            acc = acc + jnp.dot(hv, wo[c0:c0 + K, :],
                                preferred_element_type=jnp.float32)    # (L, OUT)

        # nearest-interpolation bypass came out of the fused projection
        bypass = proj[r0:r0 + L, 3 * OUT:4 * OUT]

        # LayerNorm(bypass + value) over the last dim
        h_sum = bypass + acc + bo
        mean = jnp.mean(h_sum, axis=-1, keepdims=True)
        cen = h_sum - mean
        var = jnp.mean(cen * cen, axis=-1, keepdims=True)
        out_ref[r0:r0 + L, :] = (cen * lax.rsqrt(var + LN_EPS)) * gamma + beta


# ------------------------------ host wrapper ------------------------------
def self_attention_dotprod_multihead(x, mask, params, *, grid_steps=None):
    """x: (B, L, F) f32;  mask: (B, L) f32 (1=keep, 0=mask).
    Returns (out (B, L, out_size), atten (B, head_num, L, L)).

    grid_steps: number of grid steps the batch is split into.
      * default min(B, 2): one batch per TensorCore on v7x megacore.
      * pass grid_steps=1 on single-TC v5e/v6e to fold all batches into one
        step (halves fixed per-step overhead, doubles sublane occupancy of the
        fused projection matmul)."""
    B, L, F = x.shape
    assert F == IN_SIZE
    if grid_steps is None:
        grid_steps = min(B, 2)
    assert B % grid_steps == 0
    bb = B // grid_steps
    H, OUT = HEAD_NUM, OUT_SIZE

    # Lane-dense 2-D slabs for the kernel (layout plumbing only).
    x2d = x.reshape(B * L, F)
    mask3 = mask.reshape(B, 1, L).astype(jnp.float32)

    const2d = lambda shape: pl.BlockSpec(shape, lambda g: (0, 0))

    out_shapes = (
        jax.ShapeDtypeStruct((B * L, OUT), jnp.float32),      # out rows
        jax.ShapeDtypeStruct((B * L, H * L), jnp.float32),    # packed attention
    )

    fn = pl.pallas_call(
        _self_attn_kernel,
        out_shape=out_shapes,
        grid=(grid_steps,),
        in_specs=[
            pl.BlockSpec((bb, 1, L), lambda g: (g, 0, 0)),    # mask
            pl.BlockSpec((bb * L, F), lambda g: (g, 0)),      # x rows
            const2d((F, 4 * OUT)),                            # fused [Wq*s|Wk|Wv|S]
            const2d((1, 4 * OUT)),                            # fused biases
            const2d((OUT, OUT)),                              # Wo
            const2d((1, OUT)),                                # bo
            const2d((1, OUT)),                                # gamma
            const2d((1, OUT)),                                # beta
        ],
        out_specs=[
            pl.BlockSpec((bb * L, OUT), lambda g: (g, 0)),
            pl.BlockSpec((bb * L, H * L), lambda g: (g, 0)),
        ],
        compiler_params=pltpu.CompilerParams(
            dimension_semantics=("parallel",)),
    )

    out2d, att2d = fn(mask3, x2d,
                      params["w_fused"], params["b_fused"],
                      params["wo"], params["bo"],
                      params["ln_gamma"], params["ln_beta"])

    out = out2d.reshape(B, L, OUT)
    # unpack lane-dense attention slab -> (B, head_num, L, L)
    atten = att2d.reshape(B, L, H, L).transpose(0, 2, 1, 3)
    return out, atten


# ------------------------- deterministic parameters ------------------------
def make_params(key):
    ks = jax.random.split(key, 8)
    scale_in = 1.0 / math.sqrt(IN_SIZE)
    scale_out = 1.0 / math.sqrt(OUT_SIZE)
    p = {
        # per-head Linear(in_size, key_size) weights stacked along the output
        # axis -> single (in_size, out_size) matrices (x @ W + b)
        "wq": jax.random.uniform(ks[0], (IN_SIZE, OUT_SIZE), jnp.float32,
                                 -scale_in, scale_in),
        "bq": jax.random.uniform(ks[1], (1, OUT_SIZE), jnp.float32,
                                 -scale_in, scale_in),
        "wk": jax.random.uniform(ks[2], (IN_SIZE, OUT_SIZE), jnp.float32,
                                 -scale_in, scale_in),
        "bk": jax.random.uniform(ks[3], (1, OUT_SIZE), jnp.float32,
                                 -scale_in, scale_in),
        "wv": jax.random.uniform(ks[4], (IN_SIZE, OUT_SIZE), jnp.float32,
                                 -scale_in, scale_in),
        "bv": jax.random.uniform(ks[5], (1, OUT_SIZE), jnp.float32,
                                 -scale_in, scale_in),
        "wo": jax.random.uniform(ks[6], (OUT_SIZE, OUT_SIZE), jnp.float32,
                                 -scale_out, scale_out),
        "bo": jax.random.uniform(ks[7], (1, OUT_SIZE), jnp.float32,
                                 -scale_out, scale_out),
        # LayerNorm affine params (PyTorch default init: ones / zeros)
        "ln_gamma": jnp.ones((1, OUT_SIZE), jnp.float32),
        "ln_beta": jnp.zeros((1, OUT_SIZE), jnp.float32),
    }
    # One-hot selection matrix implementing F.interpolate(mode='nearest')
    # along the feature axis: src_idx(j) = floor(j * in_size / out_size)
    src_idx = (jnp.arange(OUT_SIZE) * IN_SIZE) // OUT_SIZE
    s = jnp.zeros((IN_SIZE, OUT_SIZE), jnp.float32)
    p["s_bypass"] = s.at[src_idx, jnp.arange(OUT_SIZE)].set(1.0)

    # One-time host-side fusion: [Wq/sqrt(K) | Wk | Wv | S] -> (F, 128)
    # lane-dense RHS; 1/sqrt(key_size) folded into the q slot.
    inv = 1.0 / math.sqrt(KEY_SIZE)
    p["w_fused"] = jnp.concatenate(
        [p["wq"] * inv, p["wk"], p["wv"], p["s_bypass"]], axis=1)
    p["b_fused"] = jnp.concatenate(
        [p["bq"] * inv, p["bk"], p["bv"],
         jnp.zeros((1, OUT_SIZE), jnp.float32)], axis=1)
    return p


# --------------------------- pure-JAX reference ----------------------------
def reference_forward(x, mask, p):
    B, L, F = x.shape
    inv = 1.0 / math.sqrt(KEY_SIZE)
    q = (x @ p["wq"] + p["bq"]).reshape(B, L, HEAD_NUM, KEY_SIZE)
    k = (x @ p["wk"] + p["bk"]).reshape(B, L, HEAD_NUM, KEY_SIZE)
    v = (x @ p["wv"] + p["bv"]).reshape(B, L, HEAD_NUM, KEY_SIZE)
    score = jnp.einsum("bqhd,bkhd->bhqk", q, k) * inv
    score = jnp.where((mask == 0.0)[:, None, None, :], MIN_VALUE, score)
    atten = jax.nn.softmax(score, axis=-1)
    val = jnp.einsum("bhqk,bkhd->bqhd", atten, v).reshape(B, L, OUT_SIZE)
    val = val @ p["wo"] + p["bo"]
    bypass = x @ p["s_bypass"]
    h = bypass + val
    mu = h.mean(-1, keepdims=True)
    var = ((h - mu) ** 2).mean(-1, keepdims=True)
    out = (h - mu) / jnp.sqrt(var + LN_EPS) * p["ln_gamma"] + p["ln_beta"]
    return out, atten


if __name__ == "__main__":
    key = jax.random.PRNGKey(0)
    k_param, k_x = jax.random.split(key)

    params = make_params(k_param)
    x = jax.random.normal(k_x, (BATCH, SEQ_LEN, IN_SIZE), dtype=jnp.float32)
    # valid mask: mask out the last 2 positions of the second batch element
    mask = jnp.ones((BATCH, SEQ_LEN), jnp.float32)
    mask = mask.at[1, -2:].set(0.0)

    # Default: grid=(2,) -> one batch per TensorCore (v7x megacore friendly).
    out, atten = self_attention_dotprod_multihead(x, mask, params)
    jax.block_until_ready((out, atten))
    assert out.shape == (BATCH, SEQ_LEN, OUT_SIZE)
    assert atten.shape == (BATCH, HEAD_NUM, SEQ_LEN, SEQ_LEN)

    # Batch-folded single-grid-step variant (recommended on single-TC v5e/v6e).
    out1, atten1 = self_attention_dotprod_multihead(x, mask, params,
                                                    grid_steps=1)
    jax.block_until_ready((out1, atten1))

    # Correctness vs pure-JAX reference (loose tol: approx reciprocal softmax).
    out_exp, atten_exp = reference_forward(x, mask, params)
    assert jnp.allclose(out, out_exp, atol=2e-2, rtol=2e-2), \
        float(jnp.max(jnp.abs(out - out_exp)))
    assert jnp.allclose(atten, atten_exp, atol=2e-2, rtol=2e-2), \
        float(jnp.max(jnp.abs(atten - atten_exp)))
    # The two grid configurations must agree.
    assert jnp.allclose(out1, out, atol=1e-3, rtol=1e-3)
    assert jnp.allclose(atten1, atten, atol=1e-3, rtol=1e-3)

    print("KERNEL_OK")
</pallas_src>

<mosaic_0001>
module attributes {stable_mosaic.version = 11 : i64} {
  func.func @_self_attn_kernel(%arg0: i32, %arg1: memref<1x1x8xf32, #tpu.memory_space<vmem>>, %arg2: memref<8x16xf32, #tpu.memory_space<vmem>>, %arg3: memref<16x128xf32, #tpu.memory_space<vmem>>, %arg4: memref<1x128xf32, #tpu.memory_space<vmem>>, %arg5: memref<32x32xf32, #tpu.memory_space<vmem>>, %arg6: memref<1x32xf32, #tpu.memory_space<vmem>>, %arg7: memref<1x32xf32, #tpu.memory_space<vmem>>, %arg8: memref<1x32xf32, #tpu.memory_space<vmem>>, %arg9: memref<8x32xf32, #tpu.memory_space<vmem>>, %arg10: memref<8x32xf32, #tpu.memory_space<vmem>>) attributes {dimension_semantics = [#tpu.dimension_semantics<parallel>], iteration_bounds = array<i64: 2>, scalar_prefetch = 0 : i64, scratch_operands = 0 : i64, tpu.core_type = #tpu.core_type<tc>, window_params = [{transform_indices = @transform_0, window_bounds = array<i64: 1, 1, 8>}, {transform_indices = @transform_1, window_bounds = array<i64: 8, 16>}, {pipeline_mode = #tpu.pipeline_mode<synchronous>, transform_indices = @transform_2, window_bounds = array<i64: 16, 128>}, {pipeline_mode = #tpu.pipeline_mode<synchronous>, transform_indices = @transform_3, window_bounds = array<i64: 1, 128>}, {pipeline_mode = #tpu.pipeline_mode<synchronous>, transform_indices = @transform_4, window_bounds = array<i64: 32, 32>}, {pipeline_mode = #tpu.pipeline_mode<synchronous>, transform_indices = @transform_5, window_bounds = array<i64: 1, 32>}, {pipeline_mode = #tpu.pipeline_mode<synchronous>, transform_indices = @transform_6, window_bounds = array<i64: 1, 32>}, {pipeline_mode = #tpu.pipeline_mode<synchronous>, transform_indices = @transform_7, window_bounds = array<i64: 1, 32>}, {transform_indices = @transform_8, window_bounds = array<i64: 8, 32>}, {transform_indices = @transform_9, window_bounds = array<i64: 8, 32>}]} {
    %c0 = arith.constant 0 : index
    %c0_0 = arith.constant 0 : index
    %0 = vector.load %arg5[%c0, %c0_0] : memref<32x32xf32, #tpu.memory_space<vmem>>, vector<32x32xf32>
    %c0_1 = arith.constant 0 : index
    %c0_2 = arith.constant 0 : index
    %1 = vector.load %arg6[%c0_1, %c0_2] : memref<1x32xf32, #tpu.memory_space<vmem>>, vector<1x32xf32>
    %c0_3 = arith.constant 0 : index
    %c0_4 = arith.constant 0 : index
    %2 = vector.load %arg7[%c0_3, %c0_4] : memref<1x32xf32, #tpu.memory_space<vmem>>, vector<1x32xf32>
    %c0_5 = arith.constant 0 : index
    %c0_6 = arith.constant 0 : index
    %3 = vector.load %arg8[%c0_5, %c0_6] : memref<1x32xf32, #tpu.memory_space<vmem>>, vector<1x32xf32>
    %c0_7 = arith.constant 0 : index
    %c0_8 = arith.constant 0 : index
    %4 = vector.load %arg2[%c0_7, %c0_8] : memref<8x16xf32, #tpu.memory_space<vmem>>, vector<8x16xf32>
    %c0_9 = arith.constant 0 : index
    %c0_10 = arith.constant 0 : index
    %5 = vector.load %arg3[%c0_9, %c0_10] : memref<16x128xf32, #tpu.memory_space<vmem>>, vector<16x128xf32>
    %cst = arith.constant dense<0.000000e+00> : vector<8x128xf32>
    %6 = tpu.matmul %4, %5, %cst {dimension_numbers = #tpu.dot_dimension_numbers<[1], [0], [0], [1], [0, 0, 1, 1], [], []>} : vector<8x16xf32>, vector<16x128xf32>, vector<8x128xf32> -> vector<8x128xf32>
    %c0_11 = arith.constant 0 : index
    %c0_12 = arith.constant 0 : index
    %7 = vector.load %arg4[%c0_11, %c0_12] : memref<1x128xf32, #tpu.memory_space<vmem>>, vector<1x128xf32>
    %8 = vector.broadcast %7 : vector<1x128xf32> to vector<8x128xf32>
    %9 = arith.addf %6, %8 : vector<8x128xf32>
    %c0_13 = arith.constant 0 : index
    %c0_14 = arith.constant 0 : index
    %c0_15 = arith.constant 0 : index
    %10 = vector.load %arg1[%c0_13, %c0_14, %c0_15] : memref<1x1x8xf32, #tpu.memory_space<vmem>>, vector<1x1x8xf32>
    %11 = vector.shape_cast %10 : vector<1x1x8xf32> to vector<1x8xf32>
    %cst_16 = arith.constant 0.000000e+00 : f32
    %12 = vector.broadcast %cst_16 : f32 to vector<1x8xf32>
    %13 = arith.cmpf oeq, %11, %12 : vector<1x8xf32>
    %cst_17 = arith.constant -1.70141173E+38 : f32
    %cst_18 = arith.constant 0.000000e+00 : f32
    %14 = vector.broadcast %cst_17 : f32 to vector<1x8xf32>
    %15 = vector.broadcast %cst_18 : f32 to vector<1x8xf32>
    %16 = arith.select %13, %14, %15 : vector<1x8xi1>, vector<1x8xf32>
    %cst_19 = arith.constant 0.000000e+00 : f32
    %17 = vector.broadcast %cst_19 : f32 to vector<8x32xf32>
    %18 = vector.extract_strided_slice %9 {offsets = [0, 0], sizes = [8, 8], strides = [1, 1]} : vector<8x128xf32> to vector<8x8xf32>
    %19 = vector.extract_strided_slice %9 {offsets = [0, 32], sizes = [8, 8], strides = [1, 1]} : vector<8x128xf32> to vector<8x8xf32>
    %20 = vector.extract_strided_slice %9 {offsets = [0, 64], sizes = [8, 8], strides = [1, 1]} : vector<8x128xf32> to vector<8x8xf32>
    %cst_20 = arith.constant dense<0.000000e+00> : vector<8x8xf32>
    %21 = tpu.matmul %18, %19, %cst_20 {dimension_numbers = #tpu.dot_dimension_numbers<[1], [1], [0], [0], [0, 0, 1, 0], [], []>} : vector<8x8xf32>, vector<8x8xf32>, vector<8x8xf32> -> vector<8x8xf32>
    %22 = vector.broadcast %16 : vector<1x8xf32> to vector<8x8xf32>
    %23 = arith.addf %21, %22 : vector<8x8xf32>
    %cst_21 = arith.constant dense<0xFF800000> : vector<8xf32>
    %24 = vector.multi_reduction <maximumf>, %23, %cst_21 [1] : vector<8x8xf32> to vector<8xf32>
    %25 = vector.shape_cast %24 : vector<8xf32> to vector<8x1xf32>
    %26 = vector.broadcast %25 : vector<8x1xf32> to vector<8x8xf32>
    %27 = arith.subf %23, %26 : vector<8x8xf32>
    %28 = math.exp %27 : vector<8x8xf32>
    %cst_22 = arith.constant dense<0.000000e+00> : vector<8xf32>
    %29 = vector.multi_reduction <add>, %28, %cst_22 [1] : vector<8x8xf32> to vector<8xf32>
    %30 = vector.shape_cast %29 : vector<8xf32> to vector<8x1xf32>
    %31 = tpu.reciprocal %30 {approx = true} : vector<8x1xf32> -> vector<8x1xf32>
    %32 = vector.broadcast %31 : vector<8x1xf32> to vector<8x8xf32>
    %33 = arith.mulf %28, %32 : vector<8x8xf32>
    %c0_23 = arith.constant 0 : index
    %c0_24 = arith.constant 0 : index
    %34 = vector.load %arg10[%c0_23, %c0_24] : memref<8x32xf32, #tpu.memory_space<vmem>>, vector<8x8xf32>
    tpu.vector_store %arg10[%c0_23, %c0_24], %33 {strides = array<i32>} : memref<8x32xf32, #tpu.memory_space<vmem>>, vector<8x8xf32>,
    %cst_25 = arith.constant dense<0.000000e+00> : vector<8x8xf32>
    %35 = tpu.matmul %33, %20, %cst_25 {dimension_numbers = #tpu.dot_dimension_numbers<[1], [0], [0], [1], [0, 0, 1, 1], [], []>} : vector<8x8xf32>, vector<8x8xf32>, vector<8x8xf32> -> vector<8x8xf32>
    %36 = vector.extract_strided_slice %0 {offsets = [0, 0], sizes = [8, 32], strides = [1, 1]} : vector<32x32xf32> to vector<8x32xf32>
    %cst_26 = arith.constant dense<0.000000e+00> : vector<8x32xf32>
    %37 = tpu.matmul %35, %36, %cst_26 {dimension_numbers = #tpu.dot_dimension_numbers<[1], [0], [0], [1], [0, 0, 1, 1], [], []>} : vector<8x8xf32>, vector<8x32xf32>, vector<8x32xf32> -> vector<8x32xf32>
    %38 = arith.addf %17, %37 : vector<8x32xf32>
    %39 = vector.extract_strided_slice %9 {offsets = [0, 8], sizes = [8, 8], strides = [1, 1]} : vector<8x128xf32> to vector<8x8xf32>
    %40 = vector.extract_strided_slice %9 {offsets = [0, 40], sizes = [8, 8], strides = [1, 1]} : vector<8x128xf32> to vector<8x8xf32>
    %41 = vector.extract_strided_slice %9 {offsets = [0, 72], sizes = [8, 8], strides = [1, 1]} : vector<8x128xf32> to vector<8x8xf32>
    %cst_27 = arith.constant dense<0.000000e+00> : vector<8x8xf32>
    %42 = tpu.matmul %39, %40, %cst_27 {dimension_numbers = #tpu.dot_dimension_numbers<[1], [1], [0], [0], [0, 0, 1, 0], [], []>} : vector<8x8xf32>, vector<8x8xf32>, vector<8x8xf32> -> vector<8x8xf32>
    %43 = vector.broadcast %16 : vector<1x8xf32> to vector<8x8xf32>
    %44 = arith.addf %42, %43 : vector<8x8xf32>
    %cst_28 = arith.constant dense<0xFF800000> : vector<8xf32>
    %45 = vector.multi_reduction <maximumf>, %44, %cst_28 [1] : vector<8x8xf32> to vector<8xf32>
    %46 = vector.shape_cast %45 : vector<8xf32> to vector<8x1xf32>
    %47 = vector.broadcast %46 : vector<8x1xf32> to vector<8x8xf32>
    %48 = arith.subf %44, %47 : vector<8x8xf32>
    %49 = math.exp %48 : vector<8x8xf32>
    %cst_29 = arith.constant dense<0.000000e+00> : vector<8xf32>
    %50 = vector.multi_reduction <add>, %49, %cst_29 [1] : vector<8x8xf32> to vector<8xf32>
    %51 = vector.shape_cast %50 : vector<8xf32> to vector<8x1xf32>
    %52 = tpu.reciprocal %51 {approx = true} : vector<8x1xf32> -> vector<8x1xf32>
    %53 = vector.broadcast %52 : vector<8x1xf32> to vector<8x8xf32>
    %54 = arith.mulf %49, %53 : vector<8x8xf32>
    %c0_30 = arith.constant 0 : index
    %c8 = arith.constant 8 : index
    %55 = vector.load %arg10[%c0_30, %c8] : memref<8x32xf32, #tpu.memory_space<vmem>>, vector<8x8xf32>
    tpu.vector_store %arg10[%c0_30, %c8], %54 {strides = array<i32>} : memref<8x32xf32, #tpu.memory_space<vmem>>, vector<8x8xf32>,
    %cst_31 = arith.constant dense<0.000000e+00> : vector<8x8xf32>
    %56 = tpu.matmul %54, %41, %cst_31 {dimension_numbers = #tpu.dot_dimension_numbers<[1], [0], [0], [1], [0, 0, 1, 1], [], []>} : vector<8x8xf32>, vector<8x8xf32>, vector<8x8xf32> -> vector<8x8xf32>
    %57 = vector.extract_strided_slice %0 {offsets = [8, 0], sizes = [8, 32], strides = [1, 1]} : vector<32x32xf32> to vector<8x32xf32>
    %cst_32 = arith.constant dense<0.000000e+00> : vector<8x32xf32>
    %58 = tpu.matmul %56, %57, %cst_32 {dimension_numbers = #tpu.dot_dimension_numbers<[1], [0], [0], [1], [0, 0, 1, 1], [], []>} : vector<8x8xf32>, vector<8x32xf32>, vector<8x32xf32> -> vector<8x32xf32>
    %59 = arith.addf %38, %58 : vector<8x32xf32>
    %60 = vector.extract_strided_slice %9 {offsets = [0, 16], sizes = [8, 8], strides = [1, 1]} : vector<8x128xf32> to vector<8x8xf32>
    %61 = vector.extract_strided_slice %9 {offsets = [0, 48], sizes = [8, 8], strides = [1, 1]} : vector<8x128xf32> to vector<8x8xf32>
    %62 = vector.extract_strided_slice %9 {offsets = [0, 80], sizes = [8, 8], strides = [1, 1]} : vector<8x128xf32> to vector<8x8xf32>
    %cst_33 = arith.constant dense<0.000000e+00> : vector<8x8xf32>
    %63 = tpu.matmul %60, %61, %cst_33 {dimension_numbers = #tpu.dot_dimension_numbers<[1], [1], [0], [0], [0, 0, 1, 0], [], []>} : vector<8x8xf32>, vector<8x8xf32>, vector<8x8xf32> -> vector<8x8xf32>
    %64 = vector.broadcast %16 : vector<1x8xf32> to vector<8x8xf32>
    %65 = arith.addf %63, %64 : vector<8x8xf32>
    %cst_34 = arith.constant dense<0xFF800000> : vector<8xf32>
    %66 = vector.multi_reduction <maximumf>, %65, %cst_34 [1] : vector<8x8xf32> to vector<8xf32>
    %67 = vector.shape_cast %66 : vector<8xf32> to vector<8x1xf32>
    %68 = vector.broadcast %67 : vector<8x1xf32> to vector<8x8xf32>
    %69 = arith.subf %65, %68 : vector<8x8xf32>
    %70 = math.exp %69 : vector<8x8xf32>
    %cst_35 = arith.constant dense<0.000000e+00> : vector<8xf32>
    %71 = vector.multi_reduction <add>, %70, %cst_35 [1] : vector<8x8xf32> to vector<8xf32>
    %72 = vector.shape_cast %71 : vector<8xf32> to vector<8x1xf32>
    %73 = tpu.reciprocal %72 {approx = true} : vector<8x1xf32> -> vector<8x1xf32>
    %74 = vector.broadcast %73 : vector<8x1xf32> to vector<8x8xf32>
    %75 = arith.mulf %70, %74 : vector<8x8xf32>
    %c0_36 = arith.constant 0 : index
    %c16 = arith.constant 16 : index
    %76 = vector.load %arg10[%c0_36, %c16] : memref<8x32xf32, #tpu.memory_space<vmem>>, vector<8x8xf32>
    tpu.vector_store %arg10[%c0_36, %c16], %75 {strides = array<i32>} : memref<8x32xf32, #tpu.memory_space<vmem>>, vector<8x8xf32>,
    %cst_37 = arith.constant dense<0.000000e+00> : vector<8x8xf32>
    %77 = tpu.matmul %75, %62, %cst_37 {dimension_numbers = #tpu.dot_dimension_numbers<[1], [0], [0], [1], [0, 0, 1, 1], [], []>} : vector<8x8xf32>, vector<8x8xf32>, vector<8x8xf32> -> vector<8x8xf32>
    %78 = vector.extract_strided_slice %0 {offsets = [16, 0], sizes = [8, 32], strides = [1, 1]} : vector<32x32xf32> to vector<8x32xf32>
    %cst_38 = arith.constant dense<0.000000e+00> : vector<8x32xf32>
    %79 = tpu.matmul %77, %78, %cst_38 {dimension_numbers = #tpu.dot_dimension_numbers<[1], [0], [0], [1], [0, 0, 1, 1], [], []>} : vector<8x8xf32>, vector<8x32xf32>, vector<8x32xf32> -> vector<8x32xf32>
    %80 = arith.addf %59, %79 : vector<8x32xf32>
    %81 = vector.extract_strided_slice %9 {offsets = [0, 24], sizes = [8, 8], strides = [1, 1]} : vector<8x128xf32> to vector<8x8xf32>
    %82 = vector.extract_strided_slice %9 {offsets = [0, 56], sizes = [8, 8], strides = [1, 1]} : vector<8x128xf32> to vector<8x8xf32>
    %83 = vector.extract_strided_slice %9 {offsets = [0, 88], sizes = [8, 8], strides = [1, 1]} : vector<8x128xf32> to vector<8x8xf32>
    %cst_39 = arith.constant dense<0.000000e+00> : vector<8x8xf32>
    %84 = tpu.matmul %81, %82, %cst_39 {dimension_numbers = #tpu.dot_dimension_numbers<[1], [1], [0], [0], [0, 0, 1, 0], [], []>} : vector<8x8xf32>, vector<8x8xf32>, vector<8x8xf32> -> vector<8x8xf32>
    %85 = vector.broadcast %16 : vector<1x8xf32> to vector<8x8xf32>
    %86 = arith.addf %84, %85 : vector<8x8xf32>
    %cst_40 = arith.constant dense<0xFF800000> : vector<8xf32>
    %87 = vector.multi_reduction <maximumf>, %86, %cst_40 [1] : vector<8x8xf32> to vector<8xf32>
    %88 = vector.shape_cast %87 : vector<8xf32> to vector<8x1xf32>
    %89 = vector.broadcast %88 : vector<8x1xf32> to vector<8x8xf32>
    %90 = arith.subf %86, %89 : vector<8x8xf32>
    %91 = math.exp %90 : vector<8x8xf32>
    %cst_41 = arith.constant dense<0.000000e+00> : vector<8xf32>
    %92 = vector.multi_reduction <add>, %91, %cst_41 [1] : vector<8x8xf32> to vector<8xf32>
    %93 = vector.shape_cast %92 : vector<8xf32> to vector<8x1xf32>
    %94 = tpu.reciprocal %93 {approx = true} : vector<8x1xf32> -> vector<8x1xf32>
    %95 = vector.broadcast %94 : vector<8x1xf32> to vector<8x8xf32>
    %96 = arith.mulf %91, %95 : vector<8x8xf32>
    %c0_42 = arith.constant 0 : index
    %c24 = arith.constant 24 : index
    %97 = vector.load %arg10[%c0_42, %c24] : memref<8x32xf32, #tpu.memory_space<vmem>>, vector<8x8xf32>
    tpu.vector_store %arg10[%c0_42, %c24], %96 {strides = array<i32>} : memref<8x32xf32, #tpu.memory_space<vmem>>, vector<8x8xf32>,
    %cst_43 = arith.constant dense<0.000000e+00> : vector<8x8xf32>
    %98 = tpu.matmul %96, %83, %cst_43 {dimension_numbers = #tpu.dot_dimension_numbers<[1], [0], [0], [1], [0, 0, 1, 1], [], []>} : vector<8x8xf32>, vector<8x8xf32>, vector<8x8xf32> -> vector<8x8xf32>
    %99 = vector.extract_strided_slice %0 {offsets = [24, 0], sizes = [8, 32], strides = [1, 1]} : vector<32x32xf32> to vector<8x32xf32>
    %cst_44 = arith.constant dense<0.000000e+00> : vector<8x32xf32>
    %100 = tpu.matmul %98, %99, %cst_44 {dimension_numbers = #tpu.dot_dimension_numbers<[1], [0], [0], [1], [0, 0, 1, 1], [], []>} : vector<8x8xf32>, vector<8x32xf32>, vector<8x32xf32> -> vector<8x32xf32>
    %101 = arith.addf %80, %100 : vector<8x32xf32>
    %102 = vector.extract_strided_slice %9 {offsets = [0, 96], sizes = [8, 32], strides = [1, 1]} : vector<8x128xf32> to vector<8x32xf32>
    %103 = arith.addf %102, %101 : vector<8x32xf32>
    %104 = vector.broadcast %1 : vector<1x32xf32> to vector<8x32xf32>
    %105 = arith.addf %103, %104 : vector<8x32xf32>
    %cst_45 = arith.constant dense<0.000000e+00> : vector<8xf32>
    %106 = vector.multi_reduction <add>, %105, %cst_45 [1] : vector<8x32xf32> to vector<8xf32>
    %107 = vector.shape_cast %106 : vector<8xf32> to vector<8x1xf32>
    %cst_46 = arith.constant 3.200000e+01 : f32
    %108 = vector.broadcast %cst_46 : f32 to vector<8x1xf32>
    %109 = arith.divf %107, %108 : vector<8x1xf32>
    %110 = vector.broadcast %109 : vector<8x1xf32> to vector<8x32xf32>
    %111 = arith.subf %105, %110 : vector<8x32xf32>
    %112 = arith.mulf %111, %111 : vector<8x32xf32>
    %cst_47 = arith.constant dense<0.000000e+00> : vector<8xf32>
    %113 = vector.multi_reduction <add>, %112, %cst_47 [1] : vector<8x32xf32> to vector<8xf32>
    %114 = vector.shape_cast %113 : vector<8xf32> to vector<8x1xf32>
    %cst_48 = arith.constant 3.200000e+01 : f32
    %115 = vector.broadcast %cst_48 : f32 to vector<8x1xf32>
    %116 = arith.divf %114, %115 : vector<8x1xf32>
    %cst_49 = arith.constant 9.99999974E-6 : f32
    %117 = vector.broadcast %cst_49 : f32 to vector<8x1xf32>
    %118 = arith.addf %116, %117 : vector<8x1xf32>
    %119 = math.rsqrt %118 : vector<8x1xf32>
    %120 = vector.broadcast %119 : vector<8x1xf32> to vector<8x32xf32>
    %121 = arith.mulf %111, %120 : vector<8x32xf32>
    %122 = vector.broadcast %2 : vector<1x32xf32> to vector<8x32xf32>
    %123 = arith.mulf %121, %122 : vector<8x32xf32>
    %124 = vector.broadcast %3 : vector<1x32xf32> to vector<8x32xf32>
    %125 = arith.addf %123, %124 : vector<8x32xf32>
    %c0_50 = arith.constant 0 : index
    %c0_51 = arith.constant 0 : index
    %126 = vector.load %arg9[%c0_50, %c0_51] : memref<8x32xf32, #tpu.memory_space<vmem>>, vector<8x32xf32>
    tpu.vector_store %arg9[%c0_50, %c0_51], %125 {strides = array<i32>} : memref<8x32xf32, #tpu.memory_space<vmem>>, vector<8x32xf32>,
    return
  }
  func.func @transform_0(%arg0: i32) -> (i32, i32, i32) {
    %c0_i32 = arith.constant 0 : i32
    %c0_i32_0 = arith.constant 0 : i32
    %c0_i32_1 = arith.constant 0 : i32
    return %arg0, %c0_i32, %c0_i32_0 : i32, i32, i32
  }
  func.func @transform_1(%arg0: i32) -> (i32, i32) {
    %c0_i32 = arith.constant 0 : i32
    %c0_i32_0 = arith.constant 0 : i32
    return %arg0, %c0_i32 : i32, i32
  }
  func.func @transform_2(%arg0: i32) -> (i32, i32) {
    %c0_i32 = arith.constant 0 : i32
    %c0_i32_0 = arith.constant 0 : i32
    %c0_i32_1 = arith.constant 0 : i32
    return %c0_i32, %c0_i32_0 : i32, i32
  }
  func.func @transform_3(%arg0: i32) -> (i32, i32) {
    %c0_i32 = arith.constant 0 : i32
    %c0_i32_0 = arith.constant 0 : i32
    %c0_i32_1 = arith.constant 0 : i32
    return %c0_i32, %c0_i32_0 : i32, i32
  }
  func.func @transform_4(%arg0: i32) -> (i32, i32) {
    %c0_i32 = arith.constant 0 : i32
    %c0_i32_0 = arith.constant 0 : i32
    %c0_i32_1 = arith.constant 0 : i32
    return %c0_i32, %c0_i32_0 : i32, i32
  }
  func.func @transform_5(%arg0: i32) -> (i32, i32) {
    %c0_i32 = arith.constant 0 : i32
    %c0_i32_0 = arith.constant 0 : i32
    %c0_i32_1 = arith.constant 0 : i32
    return %c0_i32, %c0_i32_0 : i32, i32
  }
  func.func @transform_6(%arg0: i32) -> (i32, i32) {
    %c0_i32 = arith.constant 0 : i32
    %c0_i32_0 = arith.constant 0 : i32
    %c0_i32_1 = arith.constant 0 : i32
    return %c0_i32, %c0_i32_0 : i32, i32
  }
  func.func @transform_7(%arg0: i32) -> (i32, i32) {
    %c0_i32 = arith.constant 0 : i32
    %c0_i32_0 = arith.constant 0 : i32
    %c0_i32_1 = arith.constant 0 : i32
    return %c0_i32, %c0_i32_0 : i32, i32
  }
  func.func @transform_8(%arg0: i32) -> (i32, i32) {
    %c0_i32 = arith.constant 0 : i32
    %c0_i32_0 = arith.constant 0 : i32
    return %arg0, %c0_i32 : i32, i32
  }
  func.func @transform_9(%arg0: i32) -> (i32, i32) {
    %c0_i32 = arith.constant 0 : i32
    %c0_i32_0 = arith.constant 0 : i32
    return %arg0, %c0_i32 : i32, i32
  }
}

</mosaic_0001>

<llo_original>
// kernel: tpu_custom_call.1
$region0: #{tpu_custom_call.1}
  #allocation0 [shape = 'u32[]', space=smem, size = 0x4, offset = 0x4, fixed_abs, tag = 'smem constant byte address 0x4 - core index']
  #allocation1 [shape = 'u32[144,128]{1,0:T(1,128)}', space=vmem, size = 0x12000, scoped, tag = 'internal scratch']
  %s0 = inlined_call_operand.hbm [shape: f32[2,1,8], index: 0, kind: input, shape index: {}]
  %s1 = inlined_call_operand.hbm [shape: f32[16,16], index: 1, kind: input, shape index: {}]
  %s2 = inlined_call_operand.hbm [shape: f32[16,128], index: 2, kind: input, shape index: {}]
  %s3 = inlined_call_operand.vmem [shape: f32[1,128], index: 3, kind: input, shape index: {}]
  %s4 = inlined_call_operand.hbm [shape: f32[32,32], index: 4, kind: input, shape index: {}]
  %s5 = inlined_call_operand.vmem [shape: f32[1,32], index: 5, kind: input, shape index: {}]
  %s6 = inlined_call_operand.vmem [shape: f32[1,32], index: 6, kind: input, shape index: {}]
  %s7 = inlined_call_operand.vmem [shape: f32[1,32], index: 7, kind: input, shape index: {}]
  %s8 = inlined_call_operand.hbm [shape: f32[16,32], index: 8, kind: output, shape index: {0}]
  %s9 = inlined_call_operand.hbm [shape: f32[16,32], index: 9, kind: output, shape index: {1}]
  %10 = xla_tuple %s8, %s9
  %s11 = sld [smem:[#allocation0]]
  $region89: #{tpu_custom_call.1} parent=0
    _
  %s13 = ssub.s32 1, %s11
  %s14 = scalar_select 0, %s13, %s11
  $region1: #{tpu_custom_call.1} parent=0
    #allocation2 [shape = 'u8[1024]{0}', space=vmem, size = 0x400, scoped, tag = 'input window, operand 0']
    #allocation3 [shape = 's32[2]{0}', space=sflag, size = 0x8, scoped, tag = 'scoped memory for tpu_custom_call.1']
    #allocation4 [shape = 's32[2]{0}', space=sflag, size = 0x8, scoped, tag = 'scoped memory for tpu_custom_call.1']
    #allocation5 [shape = 'u8[8192]{0}', space=vmem, size = 0x2000, scoped, tag = 'input window, operand 1']
    #allocation6 [shape = 's32[2]{0}', space=sflag, size = 0x8, scoped, tag = 'scoped memory for tpu_custom_call.1']
    #allocation7 [shape = 'u8[8192]{0}', space=vmem, size = 0x2000, scoped, tag = 'input window, operand 2, single buffered']
    #allocation8 [shape = 'u8[16384]{0}', space=vmem, size = 0x4000, scoped, tag = 'input window, operand 4, single buffered']
    #allocation9 [shape = 's32[1]{0}', space=sflag, size = 0x4, scoped, tag = 'scoped memory for tpu_custom_call.1']
    #allocation10 [shape = 'u8[8192]{0}', space=vmem, size = 0x2000, scoped, tag = 'output window, operand 0']
    #allocation11 [shape = 'u8[8192]{0}', space=vmem, size = 0x2000, scoped, tag = 'output window, operand 1']
    #allocation12 [shape = 's32[2]{0}', space=sflag, size = 0x8, scoped, tag = 'scoped memory for tpu_custom_call.1']
    %15 = vsyncpa [#allocation3], 0
    %s16 = scalar_lea.sflag [#allocation3], 1
    %17 = vsyncpa %s16, 0
    %18 = vsyncpa [#allocation6], 0
    %s19 = scalar_lea.sflag [#allocation6], 1
    %20 = vsyncpa %s19, 0
    %21 = vsyncpa [#allocation9], 0
    %22 = vsyncpa [#allocation4], 0
    %s23 = scalar_lea.sflag [#allocation4], 1
    %24 = vsyncpa %s23, 0
    %25 = vsyncpa [#allocation12], 0
    %s26 = scalar_lea.sflag [#allocation12], 1
    %27 = vsyncpa %s26, 0
    loop: start=0, step=1, limit=4
    $region2: #{tpu_custom_call.1} parent=1 // loop_pre_header
      _
    $region3: #{tpu_custom_call.1} parent=1 // loop_header
      %s29 = sphi 0, %s33
      %p30 = scmp.ge.s32.totalorder %s29, 4
      %s39 = sphi 0, %s41
      %s42 = sphi 0, %s39
      %s43 = sphi 0, %s42
      %s59 = sphi 0, %s43
      %s65 = sphi 0, %s67
      %s68 = sphi 0, %s65
      %s69 = sphi 0, %s68
      %s85 = sphi 0, %s69
      %s89 = sphi 0, %s89
      %s91 = sphi 0, %s89
      %s92 = sphi 0, %s91
      %s106 = sphi 0, %s92
      %s110 = sphi 0, %s110
      %s112 = sphi 0, %s110
      %s113 = sphi 0, %s112
      %s127 = sphi 0, %s113
      %s131 = sphi 0, %s131
      %s133 = sphi 0, %s131
      %s134 = sphi 0, %s133
      %s148 = sphi 0, %s134
      %s152 = sphi 0, %s152
      %s154 = sphi 0, %s152
      %s155 = sphi 0, %s154
      %s169 = sphi 0, %s155
      %s173 = sphi 0, %s173
      %s175 = sphi 0, %s173
      %s176 = sphi 0, %s175
      %s190 = sphi 0, %s176
      %s194 = sphi 0, %s194
      %s196 = sphi 0, %s194
      %s197 = sphi 0, %s196
      %s211 = sphi 0, %s197
      %s217 = sphi 0, %s219
      %s220 = sphi 0, %s217
      %s221 = sphi 0, %s220
      %s237 = sphi 0, %s221
      %s243 = sphi 0, %s245
      %s246 = sphi 0, %s243
      %s247 = sphi 0, %s246
      %s263 = sphi 0, %s247
    $region4: #{tpu_custom_call.1} parent=1 // loop_header_branch
      %32 = sbr.rel (%p30) target = $region8
    $region5: #{tpu_custom_call.1} parent=1 // loop_body
      %s34 = ssub.s32 %s29, 1
      %s35 = ssub.s32 %s29, 2
      %s36 = sadd.s32 %s29, 1
      %s37 = ssub.s32 %s29, %s36
      %p38 = scmp.eq.s32.totalorder %s37, 0
      %s40 = sadd.s32 %s39, 1
      %s41 = scalar_select %p38, %s39, %s40
      %p44 = pneg %p38
      %p45 = scmp.eq.s32.totalorder %s29, 1
      %p46 = por %p44, %p45
      %p47 = scmp.ne.s32.totalorder %s39, %s42
      %p48 = scmp.eq.s32.totalorder %s29, 0
      %p49 = por %p47, %p48
      %p50 = scmp.ne.s32.totalorder %s39, %s42
      %p51 = scmp.eq.s32.totalorder %s34, 1
      %p52 = por %p50, %p51
      %p53 = scmp.ne.s32.totalorder %s42, %s43
      %p54 = scmp.eq.s32.totalorder %s34, 0
      %p55 = por %p53, %p54
      %p56 = scmp.ne.s32.totalorder %s42, %s43
      %p57 = scmp.eq.s32.totalorder %s35, 1
      %p58 = por %p56, %p57
      %p60 = scmp.ne.s32.totalorder %s43, %s59
      %p61 = scmp.eq.s32.totalorder %s35, 0
      %p62 = por %p60, %p61
      %s63 = ssub.s32 %s29, %s36
      %p64 = scmp.eq.s32.totalorder %s63, 0
      %s66 = sadd.s32 %s65, 1
      %s67 = scalar_select %p64, %s65, %s66
      %p70 = pneg %p64
      %p71 = scmp.eq.s32.totalorder %s29, 1
      %p72 = por %p70, %p71
      %p73 = scmp.ne.s32.totalorder %s65, %s68
      %p74 = scmp.eq.s32.totalorder %s29, 0
      %p75 = por %p73, %p74
      %p76 = scmp.ne.s32.totalorder %s65, %s68
      %p77 = scmp.eq.s32.totalorder %s34, 1
      %p78 = por %p76, %p77
      %p79 = scmp.ne.s32.totalorder %s68, %s69
      %p80 = scmp.eq.s32.totalorder %s34, 0
      %p81 = por %p79, %p80
      %p82 = scmp.ne.s32.totalorder %s68, %s69
      %p83 = scmp.eq.s32.totalorder %s35, 1
      %p84 = por %p82, %p83
      %p86 = scmp.ne.s32.totalorder %s69, %s85
      %p87 = scmp.eq.s32.totalorder %s35, 0
      %p88 = por %p86, %p87
      %s90 = sadd.s32 %s89, 1
      %p93 = scmp.eq.s32.totalorder %s29, 1
      %p94 = scmp.ne.s32.totalorder %s89, %s91
      %p95 = scmp.eq.s32.totalorder %s29, 0
      %p96 = por %p94, %p95
      %p97 = scmp.ne.s32.totalorder %s89, %s91
      %p98 = scmp.eq.s32.totalorder %s34, 1
      %p99 = por %p97, %p98
      %p100 = scmp.ne.s32.totalorder %s91, %s92
      %p101 = scmp.eq.s32.totalorder %s34, 0
      %p102 = por %p100, %p101
      %p103 = scmp.ne.s32.totalorder %s91, %s92
      %p104 = scmp.eq.s32.totalorder %s35, 1
      %p105 = por %p103, %p104
      %p107 = scmp.ne.s32.totalorder %s92, %s106
      %p108 = scmp.eq.s32.totalorder %s35, 0
      %p109 = por %p107, %p108
      %s111 = sadd.s32 %s110, 1
      %p114 = scmp.eq.s32.totalorder %s29, 1
      %p115 = scmp.ne.s32.totalorder %s110, %s112
      %p116 = scmp.eq.s32.totalorder %s29, 0
      %p117 = por %p115, %p116
      %p118 = scmp.ne.s32.totalorder %s110, %s112
      %p119 = scmp.eq.s32.totalorder %s34, 1
      %p120 = por %p118, %p119
      %p121 = scmp.ne.s32.totalorder %s112, %s113
      %p122 = scmp.eq.s32.totalorder %s34, 0
      %p123 = por %p121, %p122
      %p124 = scmp.ne.s32.totalorder %s112, %s113
      %p125 = scmp.eq.s32.totalorder %s35, 1
      %p126 = por %p124, %p125
      %p128 = scmp.ne.s32.totalorder %s113, %s127
      %p129 = scmp.eq.s32.totalorder %s35, 0
      %p130 = por %p128, %p129
      %s132 = sadd.s32 %s131, 1
      %p135 = scmp.eq.s32.totalorder %s29, 1
      %p136 = scmp.ne.s32.totalorder %s131, %s133
      %p137 = scmp.eq.s32.totalorder %s29, 0
      %p138 = por %p136, %p137
      %p139 = scmp.ne.s32.totalorder %s131, %s133
      %p140 = scmp.eq.s32.totalorder %s34, 1
      %p141 = por %p139, %p140
      %p142 = scmp.ne.s32.totalorder %s133, %s134
      %p143 = scmp.eq.s32.totalorder %s34, 0
      %p144 = por %p142, %p143
      %p145 = scmp.ne.s32.totalorder %s133, %s134
      %p146 = scmp.eq.s32.totalorder %s35, 1
      %p147 = por %p145, %p146
      %p149 = scmp.ne.s32.totalorder %s134, %s148
      %p150 = scmp.eq.s32.totalorder %s35, 0
      %p151 = por %p149, %p150
      %s153 = sadd.s32 %s152, 1
      %p156 = scmp.eq.s32.totalorder %s29, 1
      %p157 = scmp.ne.s32.totalorder %s152, %s154
      %p158 = scmp.eq.s32.totalorder %s29, 0
      %p159 = por %p157, %p158
      %p160 = scmp.ne.s32.totalorder %s152, %s154
      %p161 = scmp.eq.s32.totalorder %s34, 1
      %p162 = por %p160, %p161
      %p163 = scmp.ne.s32.totalorder %s154, %s155
      %p164 = scmp.eq.s32.totalorder %s34, 0
      %p165 = por %p163, %p164
      %p166 = scmp.ne.s32.totalorder %s154, %s155
      %p167 = scmp.eq.s32.totalorder %s35, 1
      %p168 = por %p166, %p167
      %p170 = scmp.ne.s32.totalorder %s155, %s169
      %p171 = scmp.eq.s32.totalorder %s35, 0
      %p172 = por %p170, %p171
      %s174 = sadd.s32 %s173, 1
      %p177 = scmp.eq.s32.totalorder %s29, 1
      %p178 = scmp.ne.s32.totalorder %s173, %s175
      %p179 = scmp.eq.s32.totalorder %s29, 0
      %p180 = por %p178, %p179
      %p181 = scmp.ne.s32.totalorder %s173, %s175
      %p182 = scmp.eq.s32.totalorder %s34, 1
      %p183 = por %p181, %p182
      %p184 = scmp.ne.s32.totalorder %s175, %s176
      %p185 = scmp.eq.s32.totalorder %s34, 0
      %p186 = por %p184, %p185
      %p187 = scmp.ne.s32.totalorder %s175, %s176
      %p188 = scmp.eq.s32.totalorder %s35, 1
      %p189 = por %p187, %p188
      %p191 = scmp.ne.s32.totalorder %s176, %s190
      %p192 = scmp.eq.s32.totalorder %s35, 0
      %p193 = por %p191, %p192
      %s195 = sadd.s32 %s194, 1
      %p198 = scmp.eq.s32.totalorder %s29, 1
      %p199 = scmp.ne.s32.totalorder %s194, %s196
      %p200 = scmp.eq.s32.totalorder %s29, 0
      %p201 = por %p199, %p200
      %p202 = scmp.ne.s32.totalorder %s194, %s196
      %p203 = scmp.eq.s32.totalorder %s34, 1
      %p204 = por %p202, %p203
      %p205 = scmp.ne.s32.totalorder %s196, %s197
      %p206 = scmp.eq.s32.totalorder %s34, 0
      %p207 = por %p205, %p206
      %p208 = scmp.ne.s32.totalorder %s196, %s197
      %p209 = scmp.eq.s32.totalorder %s35, 1
      %p210 = por %p208, %p209
      %p212 = scmp.ne.s32.totalorder %s197, %s211
      %p213 = scmp.eq.s32.totalorder %s35, 0
      %p214 = por %p212, %p213
      %s215 = ssub.s32 %s29, %s36
      %p216 = scmp.eq.s32.totalorder %s215, 0
      %s218 = sadd.s32 %s217, 1
      %s219 = scalar_select %p216, %s217, %s218
      %p222 = pneg %p216
      %p223 = scmp.eq.s32.totalorder %s29, 1
      %p224 = por %p222, %p223
      %p225 = scmp.ne.s32.totalorder %s217, %s220
      %p226 = scmp.eq.s32.totalorder %s29, 0
      %p227 = por %p225, %p226
      %p228 = scmp.ne.s32.totalorder %s217, %s220
      %p229 = scmp.eq.s32.totalorder %s34, 1
      %p230 = por %p228, %p229
      %p231 = scmp.ne.s32.totalorder %s220, %s221
      %p232 = scmp.eq.s32.totalorder %s34, 0
      %p233 = por %p231, %p232
      %p234 = scmp.ne.s32.totalorder %s220, %s221
      %p235 = scmp.eq.s32.totalorder %s35, 1
      %p236 = por %p234, %p235
      %p238 = scmp.ne.s32.totalorder %s221, %s237
      %p239 = scmp.eq.s32.totalorder %s35, 0
      %p240 = por %p238, %p239
      %s241 = ssub.s32 %s29, %s36
      %p242 = scmp.eq.s32.totalorder %s241, 0
      %s244 = sadd.s32 %s243, 1
      %s245 = scalar_select %p242, %s243, %s244
      %p248 = pneg %p242
      %p249 = scmp.eq.s32.totalorder %s29, 1
      %p250 = por %p248, %p249
      %p251 = scmp.ne.s32.totalorder %s243, %s246
      %p252 = scmp.eq.s32.totalorder %s29, 0
      %p253 = por %p251, %p252
      %p254 = scmp.ne.s32.totalorder %s243, %s246
      %p255 = scmp.eq.s32.totalorder %s34, 1
      %p256 = por %p254, %p255
      %p257 = scmp.ne.s32.totalorder %s246, %s247
      %p258 = scmp.eq.s32.totalorder %s34, 0
      %p259 = por %p257, %p258
      %p260 = scmp.ne.s32.totalorder %s246, %s247
      %p261 = scmp.eq.s32.totalorder %s35, 1
      %p262 = por %p260, %p261
      %p264 = scmp.ne.s32.totalorder %s247, %s263
      %p265 = scmp.eq.s32.totalorder %s35, 0
      %p266 = por %p264, %p265
      %p267 = scmp.le.s32.totalorder 1, %s29
      %p268 = scmp.lt.s32.totalorder %s29, 3
      %p269 = pnand %p267, %p268
      %p270 = pneg %p269
      // Predicated region
      $region9: #{tpu_custom_call.1} parent=5 // pred_check
        _
      $region10: #{tpu_custom_call.1} parent=5 // pred_check_branch
        %272 = sbr.rel (%p269) target = $region12
      $region11: #{tpu_custom_call.1} parent=5 // pred_region
        %s273 = ssub.s32 %s29, 1
        // Predicated region
        $region13: #{tpu_custom_call.1} parent=11 // pred_check
          %p274 = pneg %p102
        $region14: #{tpu_custom_call.1} parent=11 // pred_check_branch
          %276 = sbr.rel (%p274) target = $region16
        $region15: #{tpu_custom_call.1} parent=11 // pred_region
          %s278 = ssub.s32 256, 256
          %279 = vsyncadd [#allocation6], %s278
          %s280 = sshll.u32 [#allocation7], 4
          %s281 = int_to_ptr.vmem [resolvable:$true] %s280
          %286 = dma.hbm_to_vmem [thread:$0]  %s2, 256, %s281, [#allocation6], 128, 128, 8
        $region16: #{tpu_custom_call.1} parent=11 // pred_fallthru
          _
        // Predicated region
        $region17: #{tpu_custom_call.1} parent=11 // pred_check
          %p287 = pneg %p123
        $region18: #{tpu_custom_call.1} parent=11 // pred_check_branch
          %289 = sbr.rel (%p287) target = $region20
        $region19: #{tpu_custom_call.1} parent=11 // pred_region
          _
        $region20: #{tpu_custom_call.1} parent=11 // pred_fallthru
          _
        // Predicated region
        $region21: #{tpu_custom_call.1} parent=11 // pred_check
          %p290 = pneg %p144
        $region22: #{tpu_custom_call.1} parent=11 // pred_check_branch
          %292 = sbr.rel (%p290) target = $region24
        $region23: #{tpu_custom_call.1} parent=11 // pred_region
          %s294 = ssub.s32 512, 512
          %295 = vsyncadd [#allocation9], %s294
          %s296 = sshll.u32 [#allocation8], 4
          %s297 = int_to_ptr.vmem [resolvable:$true] %s296
          %302 = dma.hbm_to_vmem [thread:$0]  %s4, 512, %s297, [#allocation9], 128, 128, 8
        $region24: #{tpu_custom_call.1} parent=11 // pred_fallthru
          _
        // Predicated region
        $region25: #{tpu_custom_call.1} parent=11 // pred_check
          %p303 = pneg %p165
        $region26: #{tpu_custom_call.1} parent=11 // pred_check_branch
          %305 = sbr.rel (%p303) target = $region28
        $region27: #{tpu_custom_call.1} parent=11 // pred_region
          _
        $region28: #{tpu_custom_call.1} parent=11 // pred_fallthru
          _
        // Predicated region
        $region29: #{tpu_custom_call.1} parent=11 // pred_check
          %p306 = pneg %p186
        $region30: #{tpu_custom_call.1} parent=11 // pred_check_branch
          %308 = sbr.rel (%p306) target = $region32
        $region31: #{tpu_custom_call.1} parent=11 // pred_region
          _
        $region32: #{tpu_custom_call.1} parent=11 // pred_fallthru
          _
        // Predicated region
        $region33: #{tpu_custom_call.1} parent=11 // pred_check
          %p309 = pneg %p207
        $region34: #{tpu_custom_call.1} parent=11 // pred_check_branch
          %311 = sbr.rel (%p309) target = $region36
        $region35: #{tpu_custom_call.1} parent=11 // pred_region
          _
        $region36: #{tpu_custom_call.1} parent=11 // pred_fallthru
          _
      $region12: #{tpu_custom_call.1} parent=5 // pred_fallthru
        _
      %p312 = scmp.lt.s32.totalorder %s29, 2
      // Predicated region
      $region37: #{tpu_custom_call.1} parent=5 // pred_check
        %p313 = pneg %p312
      $region38: #{tpu_custom_call.1} parent=5 // pred_check_branch
        %315 = sbr.rel (%p313) target = $region40
      $region39: #{tpu_custom_call.1} parent=5 // pred_region
        // Predicated region
        $region41: #{tpu_custom_call.1} parent=39 // pred_check
          %p316 = pneg %p49
        $region42: #{tpu_custom_call.1} parent=39 // pred_check_branch
          %318 = sbr.rel (%p316) target = $region44
        $region43: #{tpu_custom_call.1} parent=39 // pred_region
          %s319 = sand.u32 %s39, 1
          %s320 = scalar_lea.sflag [#allocation3], %s319
          %s321 = sand.u32 %s39, 1
          %s322 = scalar_lea.vmem [#allocation2], %s321
          %s324 = ssub.s32 16, 16
          %325 = vsyncadd %s320, %s324
          %s326 = smul.addr %s29, 16
          %s327 = scalar_lea.hbm %s0, %s326
          %s329 = sshll.u32 %s322, 4
          %s330 = int_to_ptr.vmem [resolvable:$true] %s329
          %332 = dma.hbm_to_vmem [thread:$0]  %s327, 16, %s330, %s320
        $region44: #{tpu_custom_call.1} parent=39 // pred_fallthru
          _
        // Predicated region
        $region45: #{tpu_custom_call.1} parent=39 // pred_check
          %p333 = pneg %p75
        $region46: #{tpu_custom_call.1} parent=39 // pred_check_branch
          %335 = sbr.rel (%p333) target = $region48
        $region47: #{tpu_custom_call.1} parent=39 // pred_region
          %s336 = sand.u32 %s29, 1
          %s337 = scalar_lea.sflag [#allocation6], %s336
          %s338 = sand.u32 %s65, 1
          %s339 = smul.addr %s338, 8
          %s340 = scalar_lea.vmem [#allocation5], %s339
          %s342 = ssub.s32 128, 128
          %343 = vsyncadd %s337, %s342
          %s344 = smul.addr %s29, 128
          %s345 = scalar_lea.hbm %s1, %s344
          %s347 = sshll.u32 %s340, 4
          %s348 = int_to_ptr.vmem [resolvable:$true] %s347
          %350 = dma.hbm_to_vmem [thread:$0]  %s345, 128, %s348, %s337
        $region48: #{tpu_custom_call.1} parent=39 // pred_fallthru
          _
      $region40: #{tpu_custom_call.1} parent=5 // pred_fallthru
        _
      %p351 = scmp.le.s32.totalorder 1, %s29
      %p352 = scmp.lt.s32.totalorder %s29, 3
      %p353 = pnand %p351, %p352
      %p354 = pneg %p353
      // Predicated region
      $region49: #{tpu_custom_call.1} parent=5 // pred_check
        _
      $region50: #{tpu_custom_call.1} parent=5 // pred_check_branch
        %356 = sbr.rel (%p353) target = $region52
      $region51: #{tpu_custom_call.1} parent=5 // pred_region
        %s357 = ssub.s32 %s29, 1
        %s358 = sand.u32 %s42, 1
        %s359 = scalar_lea.sflag [#allocation3], %s358
        %s360 = sand.u32 %s42, 1
        %s361 = scalar_lea.vmem [#allocation2], %s360
        // Predicated region
        $region53: #{tpu_custom_call.1} parent=51 // pred_check
          %p362 = pneg %p55
        $region54: #{tpu_custom_call.1} parent=51 // pred_check_branch
          %364 = sbr.rel (%p362) target = $region56
        $region55: #{tpu_custom_call.1} parent=51 // pred_region
          %365 = dma.done %s359, 16
        $region56: #{tpu_custom_call.1} parent=51 // pred_fallthru
          _
        %s366 = sand.u32 %s34, 1
        %s367 = scalar_lea.sflag [#allocation6], %s366
        %s368 = sand.u32 %s68, 1
        %s369 = smul.addr %s368, 8
        %s370 = scalar_lea.vmem [#allocation5], %s369
        // Predicated region
        $region57: #{tpu_custom_call.1} parent=51 // pred_check
          %p371 = pneg %p81
        $region58: #{tpu_custom_call.1} parent=51 // pred_check_branch
          %373 = sbr.rel (%p371) target = $region60
        $region59: #{tpu_custom_call.1} parent=51 // pred_region
          %374 = dma.done %s367, 128
        $region60: #{tpu_custom_call.1} parent=51 // pred_fallthru
          _
        // Predicated region
        $region61: #{tpu_custom_call.1} parent=51 // pred_check
          %p375 = pneg %p102
        $region62: #{tpu_custom_call.1} parent=51 // pred_check_branch
          %377 = sbr.rel (%p375) target = $region64
        $region63: #{tpu_custom_call.1} parent=51 // pred_region
          %378 = dma.done [#allocation6], 256
        $region64: #{tpu_custom_call.1} parent=51 // pred_fallthru
          _
        // Predicated region
        $region65: #{tpu_custom_call.1} parent=51 // pred_check
          %p379 = pneg %p144
        $region66: #{tpu_custom_call.1} parent=51 // pred_check_branch
          %381 = sbr.rel (%p379) target = $region68
        $region67: #{tpu_custom_call.1} parent=51 // pred_region
          %382 = dma.done [#allocation9], 512
        $region68: #{tpu_custom_call.1} parent=51 // pred_fallthru
          _
        %s383 = sand.u32 %s42, 1
        %s384 = scalar_lea.sflag [#allocation3], %s383
        %s385 = sand.u32 %s42, 1
        %s386 = scalar_lea.vmem [#allocation2], %s385
        %p387 = pneg %p55
        %p388 = pneg %p52
        %s389 = sand.u32 %s34, 1
        %s390 = scalar_lea.sflag [#allocation6], %s389
        %s391 = sand.u32 %s68, 1
        %s392 = smul.addr %s391, 8
        %s393 = scalar_lea.vmem [#allocation5], %s392
        %p394 = pneg %p81
        %p395 = pneg %p78
        %p396 = pneg %p102
        %p397 = pneg %p99
        %p398 = pneg %p123
        %p399 = pneg %p120
        %p400 = pneg %p144
        %p401 = pneg %p141
        %p402 = pneg %p165
        %p403 = pneg %p162
        %p404 = pneg %p186
        %p405 = pneg %p183
        %p406 = pneg %p207
        %p407 = pneg %p204
        %p408 = pneg %p233
        %p409 = pneg %p230
        %s410 = sand.u32 %s220, 1
        %s411 = scalar_lea.sflag [#allocation4], %s410
        %s412 = sand.u32 %s220, 1
        %s413 = smul.addr %s412, 8
        %s414 = scalar_lea.vmem [#allocation10], %s413
        %p415 = pneg %p259
        %p416 = pneg %p256
        %s417 = sand.u32 %s246, 1
        %s418 = scalar_lea.sflag [#allocation12], %s417
        %s419 = sand.u32 %s246, 1
        %s420 = smul.addr %s419, 8
        %s421 = scalar_lea.vmem [#allocation11], %s420
        %v422 = vld [vmem:[#allocation8] sm:$0xff]
        %v423 = vld [vmem:[#allocation8 + $0x8] sm:$0xff]
        %v424 = vld [vmem:[#allocation8 + $0x10] sm:$0xff]
        %v425 = vld [vmem:[#allocation8 + $0x18] sm:$0xff]
        %v426 = vld [vmem:[%s5] sm:$0x1]
        %v427 = vld [vmem:[%s6] sm:$0x1]
        %v428 = vld [vmem:[%s7] sm:$0x1]
        %v429 = vld [vmem:[%s370] sm:$0xff]
        %v430 = vld [vmem:[#allocation7] sm:$0xff]
        %v431 = vld [vmem:[#allocation7 + $0x8] sm:$0xff]
        %v432 = vld [vmem:[%s3] sm:$0x1]
        %v434 = vlaneseq
        %v435 = vshrl.u32 %v434, 7
        %v436 = vsub.s32 0, %v435
        %v437 = vrot.slane %v432, %v436
        %vm439 = vcmask 130048
        %v441 = vsel %vm439, %v429, 0
        %443 = vmatprep.subr.mxu0 0.0
        %444 = vmatpush1.msra.mxu0 %v430
        %445 = vmatprep.subr.mxu0 0.0
        %446 = vmatpush1.msra.mxu0 %v431
        %447 = vmatprep.subr.mxu0 0.0
        %448 = vmatpush1.msra.mxu0 0.0
        %449 = vmatprep.subr.mxu0 0.0
        %450 = vmatpush1.msra.mxu0 0.0
        %451 = vmatprep.subr.mxu0 0.0
        %452 = vmatpush1.msra.mxu0 0.0
        %453 = vmatprep.subr.mxu0 0.0
        %454 = vmatpush1.msra.mxu0 0.0
        %455 = vmatprep.subr.mxu0 0.0
        %456 = vmatpush1.msra.mxu0 0.0
        %457 = vmatprep.subr.mxu0 0.0
        %458 = vmatpush1.msra.mxu0 0.0
        %459 = vmatprep.subr.mxu0 0.0
        %460 = vmatpush1.msra.mxu0 0.0
        %461 = vmatprep.subr.mxu0 0.0
        %462 = vmatpush1.msra.mxu0 0.0
        %463 = vmatprep.subr.mxu0 0.0
        %464 = vmatpush1.msra.mxu0 0.0
        %465 = vmatprep.subr.mxu0 0.0
        %466 = vmatpush1.msra.mxu0 0.0
        %467 = vmatprep.subr.mxu0 0.0
        %468 = vmatpush1.msra.mxu0 0.0
        %469 = vmatprep.subr.mxu0 0.0
        %470 = vmatpush1.msra.mxu0 0.0
        %471 = vmatprep.subr.mxu0 0.0
        %472 = vmatpush1.msra.mxu0 0.0
        %473 = vmatprep.subr.mxu0 0.0
        %474 = vmatpush1.msra.mxu0 0.0
        %475 = vmatprep.subr.mxu0 0.0
        %476 = vmatpush1.msra.mxu0 0.0
        %477 = vmatprep.subr.mxu0 0.0
        %478 = vmatpush1.msra.mxu0 0.0
        %479 = vmatprep.subr.mxu0 0.0
        %480 = vmatpush1.msra.mxu0 0.0
        %481 = vmatprep.subr.mxu0 0.0
        %482 = vmatpush1.msra.mxu0 0.0
        %483 = vmatprep.subr.mxu0 0.0
        %484 = vmatpush1.msra.mxu0 0.0
        %485 = vmatprep.subr.mxu0 0.0
        %486 = vmatpush1.msra.mxu0 0.0
        %487 = vmatprep.subr.mxu0 0.0
        %488 = vmatpush1.msra.mxu0 0.0
        %489 = vmatprep.subr.mxu0 0.0
        %490 = vmatpush1.msra.mxu0 0.0
        %491 = vmatprep.subr.mxu0 0.0
        %492 = vmatpush1.msra.mxu0 0.0
        %493 = vmatprep.subr.mxu0 0.0
        %494 = vmatpush1.msra.mxu0 0.0
        %495 = vmatprep.subr.mxu0 0.0
        %496 = vmatpush1.msra.mxu0 0.0
        %497 = vmatprep.subr.mxu0 0.0
        %498 = vmatpush1.msra.mxu0 0.0
        %499 = vmatprep.subr.mxu0 0.0
        %500 = vmatpush1.msra.mxu0 0.0
        %501 = vmatprep.subr.mxu0 0.0
        %502 = vmatpush1.msra.mxu0 0.0
        %503 = vmatprep.subr.mxu0 0.0
        %504 = vmatpush1.msra.mxu0 0.0
        %505 = vmatprep.subr.mxu0 0.0
        %506 = vmatpush1.msra.mxu0 0.0
        %507 = vmatprep.mubr.f32.mxu0 0.0
        %508 = vmatmul.mubr.f32.gmra.mrb[0].mxu0 %v441
        %v509 = vpop.f32.mrb[0].mxu0
        %v510 = vadd.f32 %v437, %v509
        %v511 = vpop.f32.mrb[0].mxu0
        %512 = vdwg.mxu0
        %v513 = vld [vmem:[%s361] sm:$0x1]
        %vm514 = vcmp.eq.f32.partialorder %v513, 0.0
        %v515 = vsel %vm514, -1.7014117e+38, 0.0
        %v517 = vlaneseq
        %v518 = vshrl.u32 %v517, 7
        %v519 = vsub.s32 0, %v518
        %v520 = vrot.slane %v515, %v519
        %523 = vrot.lane.b32.xlu0 %v510, 96
        %v524 = vpop.permute.xlu0 %523
        %vm525 = vcmask 64512
        %v526 = vsel %vm525, %v510, 0
        %v528 = vsel %vm525, %v524, 0
        %530 = vmatprep.subr.mxu0 0.0
        %531 = vmatpush1.xpose.msra.mxu0 %v528
        %532 = vmatprep.subr.mxu0 0.0
        %533 = vmatpush1.xpose.msra.mxu0 0.0
        %534 = vmatprep.subr.mxu0 0.0
        %535 = vmatpush1.xpose.msra.mxu0 0.0
        %536 = vmatprep.subr.mxu0 0.0
        %537 = vmatpush1.xpose.msra.mxu0 0.0
        %538 = vmatprep.subr.mxu0 0.0
        %539 = vmatpush1.xpose.msra.mxu0 0.0
        %540 = vmatprep.subr.mxu0 0.0
        %541 = vmatpush1.xpose.msra.mxu0 0.0
        %542 = vmatprep.subr.mxu0 0.0
        %543 = vmatpush1.xpose.msra.mxu0 0.0
        %544 = vmatprep.subr.mxu0 0.0
        %545 = vmatpush1.xpose.msra.mxu0 0.0
        %546 = vmatprep.subr.mxu0 0.0
        %547 = vmatpush1.xpose.msra.mxu0 0.0
        %548 = vmatprep.subr.mxu0 0.0
        %549 = vmatpush1.xpose.msra.mxu0 0.0
        %550 = vmatprep.subr.mxu0 0.0
        %551 = vmatpush1.xpose.msra.mxu0 0.0
        %552 = vmatprep.subr.mxu0 0.0
        %553 = vmatpush1.xpose.msra.mxu0 0.0
        %554 = vmatprep.subr.mxu0 0.0
        %555 = vmatpush1.xpose.msra.mxu0 0.0
        %556 = vmatprep.subr.mxu0 0.0
        %557 = vmatpush1.xpose.msra.mxu0 0.0
        %558 = vmatprep.subr.mxu0 0.0
        %559 = vmatpush1.xpose.msra.mxu0 0.0
        %560 = vmatprep.subr.mxu0 0.0
        %561 = vmatpush1.xpose.msra.mxu0 0.0
        %562 = vmatprep.subr.mxu0 0.0
        %563 = vmatpush1.xpose.msra.mxu0 0.0
        %564 = vmatprep.subr.mxu0 0.0
        %565 = vmatpush1.xpose.msra.mxu0 0.0
        %566 = vmatprep.subr.mxu0 0.0
        %567 = vmatpush1.xpose.msra.mxu0 0.0
        %568 = vmatprep.subr.mxu0 0.0
        %569 = vmatpush1.xpose.msra.mxu0 0.0
        %570 = vmatprep.subr.mxu0 0.0
        %571 = vmatpush1.xpose.msra.mxu0 0.0
        %572 = vmatprep.subr.mxu0 0.0
        %573 = vmatpush1.xpose.msra.mxu0 0.0
        %574 = vmatprep.subr.mxu0 0.0
        %575 = vmatpush1.xpose.msra.mxu0 0.0
        %576 = vmatprep.subr.mxu0 0.0
        %577 = vmatpush1.xpose.msra.mxu0 0.0
        %578 = vmatprep.subr.mxu0 0.0
        %579 = vmatpush1.xpose.msra.mxu0 0.0
        %580 = vmatprep.subr.mxu0 0.0
        %581 = vmatpush1.xpose.msra.mxu0 0.0
        %582 = vmatprep.subr.mxu0 0.0
        %583 = vmatpush1.xpose.msra.mxu0 0.0
        %584 = vmatprep.subr.mxu0 0.0
        %585 = vmatpush1.xpose.msra.mxu0 0.0
        %586 = vmatprep.subr.mxu0 0.0
        %587 = vmatpush1.xpose.msra.mxu0 0.0
        %588 = vmatprep.subr.mxu0 0.0
        %589 = vmatpush1.xpose.msra.mxu0 0.0
        %590 = vmatprep.subr.mxu0 0.0
        %591 = vmatpush1.xpose.msra.mxu0 0.0
        %592 = vmatprep.subr.mxu0 0.0
        %593 = vmatpush1.xpose.msra.mxu0 0.0
        %594 = vmatprep.mubr.f32.mxu0 0.0
        %595 = vmatmul.mubr.f32.gmra.mrb[0].mxu0 %v526
        %v596 = vpop.f32.mrb[0].mxu0
        %v597 = vadd.f32 %v520, %v596
        %v598 = vpop.f32.mrb[0].mxu0
        %599 = vdwg.mxu0
        %v600 = vsel %vm525, %v597, -inf
        %601 = vmax.xlane.f32.xlu0 %v600
        %v602 = vpop.xlane.xlu0 %601
        %v603 = vsub.f32 %v597, %v602
        %v604 = vmul.f32 %v603, 1.442695
        %v605 = vpow.pop %v604
        %v606 = vsel %vm525, %v605, 0.0
        %607 = vadd.xlane.f32.xlu0 %v606
        %v608 = vpop.xlane.xlu0 %607
        %v609 = vrcp.pop %v608
        %v610 = vmul.f32 %v605, %v609
        %611 = vst.msk [vmem:[%s421] sm:$0xff] %vm525, %v610
        %612 = vrot.lane.b32.xlu0 %v510, 64
        %v613 = vpop.permute.xlu0 %612
        %v616 = vsel %vm525, %v610, 0
        %618 = vmatprep.subr.mxu0 0.0
        %619 = vmatpush1.msra.mxu0 %v613
        %620 = vmatprep.subr.mxu0 0.0
        %621 = vmatpush1.msra.mxu0 0.0
        %622 = vmatprep.subr.mxu0 0.0
        %623 = vmatpush1.msra.mxu0 0.0
        %624 = vmatprep.subr.mxu0 0.0
        %625 = vmatpush1.msra.mxu0 0.0
        %626 = vmatprep.subr.mxu0 0.0
        %627 = vmatpush1.msra.mxu0 0.0
        %628 = vmatprep.subr.mxu0 0.0
        %629 = vmatpush1.msra.mxu0 0.0
        %630 = vmatprep.subr.mxu0 0.0
        %631 = vmatpush1.msra.mxu0 0.0
        %632 = vmatprep.subr.mxu0 0.0
        %633 = vmatpush1.msra.mxu0 0.0
        %634 = vmatprep.subr.mxu0 0.0
        %635 = vmatpush1.msra.mxu0 0.0
        %636 = vmatprep.subr.mxu0 0.0
        %637 = vmatpush1.msra.mxu0 0.0
        %638 = vmatprep.subr.mxu0 0.0
        %639 = vmatpush1.msra.mxu0 0.0
        %640 = vmatprep.subr.mxu0 0.0
        %641 = vmatpush1.msra.mxu0 0.0
        %642 = vmatprep.subr.mxu0 0.0
        %643 = vmatpush1.msra.mxu0 0.0
        %644 = vmatprep.subr.mxu0 0.0
        %645 = vmatpush1.msra.mxu0 0.0
        %646 = vmatprep.subr.mxu0 0.0
        %647 = vmatpush1.msra.mxu0 0.0
        %648 = vmatprep.subr.mxu0 0.0
        %649 = vmatpush1.msra.mxu0 0.0
        %650 = vmatprep.subr.mxu0 0.0
        %651 = vmatpush1.msra.mxu0 0.0
        %652 = vmatprep.subr.mxu0 0.0
        %653 = vmatpush1.msra.mxu0 0.0
        %654 = vmatprep.subr.mxu0 0.0
        %655 = vmatpush1.msra.mxu0 0.0
        %656 = vmatprep.subr.mxu0 0.0
        %657 = vmatpush1.msra.mxu0 0.0
        %658 = vmatprep.subr.mxu0 0.0
        %659 = vmatpush1.msra.mxu0 0.0
        %660 = vmatprep.subr.mxu0 0.0
        %661 = vmatpush1.msra.mxu0 0.0
        %662 = vmatprep.subr.mxu0 0.0
        %663 = vmatpush1.msra.mxu0 0.0
        %664 = vmatprep.subr.mxu0 0.0
        %665 = vmatpush1.msra.mxu0 0.0
        %666 = vmatprep.subr.mxu0 0.0
        %667 = vmatpush1.msra.mxu0 0.0
        %668 = vmatprep.subr.mxu0 0.0
        %669 = vmatpush1.msra.mxu0 0.0
        %670 = vmatprep.subr.mxu0 0.0
        %671 = vmatpush1.msra.mxu0 0.0
        %672 = vmatprep.subr.mxu0 0.0
        %673 = vmatpush1.msra.mxu0 0.0
        %674 = vmatprep.subr.mxu0 0.0
        %675 = vmatpush1.msra.mxu0 0.0
        %676 = vmatprep.subr.mxu0 0.0
        %677 = vmatpush1.msra.mxu0 0.0
        %678 = vmatprep.subr.mxu0 0.0
        %679 = vmatpush1.msra.mxu0 0.0
        %680 = vmatprep.subr.mxu0 0.0
        %681 = vmatpush1.msra.mxu0 0.0
        %682 = vmatprep.mubr.f32.mxu0 0.0
        %683 = vmatmul.mubr.f32.gmra.mrb[0].mxu0 %v616
        %v684 = vpop.f32.mrb[0].mxu0
        %v685 = vadd.f32 0.0, %v684
        %v686 = vpop.f32.mrb[0].mxu0
        %687 = vdwg.mxu0
        %688 = vrot.lane.b32.xlu0 %v510, 120
        %v689 = vpop.permute.xlu0 %688
        %690 = vrot.lane.b32.xlu0 %v510, 88
        %v691 = vpop.permute.xlu0 %690
        %v692 = vsel %vm525, %v689, 0
        %v694 = vsel %vm525, %v691, 0
        %696 = vmatprep.subr.mxu0 0.0
        %697 = vmatpush1.xpose.msra.mxu0 %v694
        %698 = vmatprep.subr.mxu0 0.0
        %699 = vmatpush1.xpose.msra.mxu0 0.0
        %700 = vmatprep.subr.mxu0 0.0
        %701 = vmatpush1.xpose.msra.mxu0 0.0
        %702 = vmatprep.subr.mxu0 0.0
        %703 = vmatpush1.xpose.msra.mxu0 0.0
        %704 = vmatprep.subr.mxu0 0.0
        %705 = vmatpush1.xpose.msra.mxu0 0.0
        %706 = vmatprep.subr.mxu0 0.0
        %707 = vmatpush1.xpose.msra.mxu0 0.0
        %708 = vmatprep.subr.mxu0 0.0
        %709 = vmatpush1.xpose.msra.mxu0 0.0
        %710 = vmatprep.subr.mxu0 0.0
        %711 = vmatpush1.xpose.msra.mxu0 0.0
        %712 = vmatprep.subr.mxu0 0.0
        %713 = vmatpush1.xpose.msra.mxu0 0.0
        %714 = vmatprep.subr.mxu0 0.0
        %715 = vmatpush1.xpose.msra.mxu0 0.0
        %716 = vmatprep.subr.mxu0 0.0
        %717 = vmatpush1.xpose.msra.mxu0 0.0
        %718 = vmatprep.subr.mxu0 0.0
        %719 = vmatpush1.xpose.msra.mxu0 0.0
        %720 = vmatprep.subr.mxu0 0.0
        %721 = vmatpush1.xpose.msra.mxu0 0.0
        %722 = vmatprep.subr.mxu0 0.0
        %723 = vmatpush1.xpose.msra.mxu0 0.0
        %724 = vmatprep.subr.mxu0 0.0
        %725 = vmatpush1.xpose.msra.mxu0 0.0
        %726 = vmatprep.subr.mxu0 0.0
        %727 = vmatpush1.xpose.msra.mxu0 0.0
        %728 = vmatprep.subr.mxu0 0.0
        %729 = vmatpush1.xpose.msra.mxu0 0.0
        %730 = vmatprep.subr.mxu0 0.0
        %731 = vmatpush1.xpose.msra.mxu0 0.0
        %732 = vmatprep.subr.mxu0 0.0
        %733 = vmatpush1.xpose.msra.mxu0 0.0
        %734 = vmatprep.subr.mxu0 0.0
        %735 = vmatpush1.xpose.msra.mxu0 0.0
        %736 = vmatprep.subr.mxu0 0.0
        %737 = vmatpush1.xpose.msra.mxu0 0.0
        %738 = vmatprep.subr.mxu0 0.0
        %739 = vmatpush1.xpose.msra.mxu0 0.0
        %740 = vmatprep.subr.mxu0 0.0
        %741 = vmatpush1.xpose.msra.mxu0 0.0
        %742 = vmatprep.subr.mxu0 0.0
        %743 = vmatpush1.xpose.msra.mxu0 0.0
        %744 = vmatprep.subr.mxu0 0.0
        %745 = vmatpush1.xpose.msra.mxu0 0.0
        %746 = vmatprep.subr.mxu0 0.0
        %747 = vmatpush1.xpose.msra.mxu0 0.0
        %748 = vmatprep.subr.mxu0 0.0
        %749 = vmatpush1.xpose.msra.mxu0 0.0
        %750 = vmatprep.subr.mxu0 0.0
        %751 = vmatpush1.xpose.msra.mxu0 0.0
        %752 = vmatprep.subr.mxu0 0.0
        %753 = vmatpush1.xpose.msra.mxu0 0.0
        %754 = vmatprep.subr.mxu0 0.0
        %755 = vmatpush1.xpose.msra.mxu0 0.0
        %756 = vmatprep.subr.mxu0 0.0
        %757 = vmatpush1.xpose.msra.mxu0 0.0
        %758 = vmatprep.subr.mxu0 0.0
        %759 = vmatpush1.xpose.msra.mxu0 0.0
        %760 = vmatprep.mubr.f32.mxu0 0.0
        %761 = vmatmul.mubr.f32.gmra.mrb[0].mxu0 %v692
        %v762 = vpop.f32.mrb[0].mxu0
        %v763 = vadd.f32 %v520, %v762
        %v764 = vpop.f32.mrb[0].mxu0
        %765 = vdwg.mxu0
        %v766 = vsel %vm525, %v763, -inf
        %767 = vmax.xlane.f32.xlu0 %v766
        %v768 = vpop.xlane.xlu0 %767
        %v769 = vsub.f32 %v763, %v768
        %v770 = vmul.f32 %v769, 1.442695
        %v771 = vpow.pop %v770
        %v772 = vsel %vm525, %v771, 0.0
        %773 = vadd.xlane.f32.xlu0 %v772
        %v774 = vpop.xlane.xlu0 %773
        %v775 = vrcp.pop %v774
        %v776 = vmul.f32 %v771, %v775
        %778 = vrot.lane.b32.xlu0 %v776, 8
        %v779 = vpop.permute.xlu0 %778
        %vm781 = vcmask 130112
        %782 = vst.msk [vmem:[%s421] sm:$0xff] %vm781, %v779
        %783 = vrot.lane.b32.xlu0 %v510, 56
        %v784 = vpop.permute.xlu0 %783
        %v786 = vsel %vm525, %v776, 0
        %788 = vmatprep.subr.mxu0 0.0
        %789 = vmatpush1.msra.mxu0 %v784
        %790 = vmatprep.subr.mxu0 0.0
        %791 = vmatpush1.msra.mxu0 0.0
        %792 = vmatprep.subr.mxu0 0.0
        %793 = vmatpush1.msra.mxu0 0.0
        %794 = vmatprep.subr.mxu0 0.0
        %795 = vmatpush1.msra.mxu0 0.0
        %796 = vmatprep.subr.mxu0 0.0
        %797 = vmatpush1.msra.mxu0 0.0
        %798 = vmatprep.subr.mxu0 0.0
        %799 = vmatpush1.msra.mxu0 0.0
        %800 = vmatprep.subr.mxu0 0.0
        %801 = vmatpush1.msra.mxu0 0.0
        %802 = vmatprep.subr.mxu0 0.0
        %803 = vmatpush1.msra.mxu0 0.0
        %804 = vmatprep.subr.mxu0 0.0
        %805 = vmatpush1.msra.mxu0 0.0
        %806 = vmatprep.subr.mxu0 0.0
        %807 = vmatpush1.msra.mxu0 0.0
        %808 = vmatprep.subr.mxu0 0.0
        %809 = vmatpush1.msra.mxu0 0.0
        %810 = vmatprep.subr.mxu0 0.0
        %811 = vmatpush1.msra.mxu0 0.0
        %812 = vmatprep.subr.mxu0 0.0
        %813 = vmatpush1.msra.mxu0 0.0
        %814 = vmatprep.subr.mxu0 0.0
        %815 = vmatpush1.msra.mxu0 0.0
        %816 = vmatprep.subr.mxu0 0.0
        %817 = vmatpush1.msra.mxu0 0.0
        %818 = vmatprep.subr.mxu0 0.0
        %819 = vmatpush1.msra.mxu0 0.0
        %820 = vmatprep.subr.mxu0 0.0
        %821 = vmatpush1.msra.mxu0 0.0
        %822 = vmatprep.subr.mxu0 0.0
        %823 = vmatpush1.msra.mxu0 0.0
        %824 = vmatprep.subr.mxu0 0.0
        %825 = vmatpush1.msra.mxu0 0.0
        %826 = vmatprep.subr.mxu0 0.0
        %827 = vmatpush1.msra.mxu0 0.0
        %828 = vmatprep.subr.mxu0 0.0
        %829 = vmatpush1.msra.mxu0 0.0
        %830 = vmatprep.subr.mxu0 0.0
        %831 = vmatpush1.msra.mxu0 0.0
        %832 = vmatprep.subr.mxu0 0.0
        %833 = vmatpush1.msra.mxu0 0.0
        %834 = vmatprep.subr.mxu0 0.0
        %835 = vmatpush1.msra.mxu0 0.0
        %836 = vmatprep.subr.mxu0 0.0
        %837 = vmatpush1.msra.mxu0 0.0
        %838 = vmatprep.subr.mxu0 0.0
        %839 = vmatpush1.msra.mxu0 0.0
        %840 = vmatprep.subr.mxu0 0.0
        %841 = vmatpush1.msra.mxu0 0.0
        %842 = vmatprep.subr.mxu0 0.0
        %843 = vmatpush1.msra.mxu0 0.0
        %844 = vmatprep.subr.mxu0 0.0
        %845 = vmatpush1.msra.mxu0 0.0
        %846 = vmatprep.subr.mxu0 0.0
        %847 = vmatpush1.msra.mxu0 0.0
        %848 = vmatprep.subr.mxu0 0.0
        %849 = vmatpush1.msra.mxu0 0.0
        %850 = vmatprep.subr.mxu0 0.0
        %851 = vmatpush1.msra.mxu0 0.0
        %852 = vmatprep.mubr.f32.mxu0 0.0
        %853 = vmatmul.mubr.f32.gmra.mrb[0].mxu0 %v786
        %v854 = vpop.f32.mrb[0].mxu0
        %v855 = vadd.f32 0.0, %v854
        %v856 = vpop.f32.mrb[0].mxu0
        %857 = vdwg.mxu0
        %v859 = vsel %vm525, %v855, 0
        %861 = vmatprep.subr.mxu0 0.0
        %862 = vmatpush1.msra.mxu0 %v423
        %863 = vmatprep.subr.mxu0 0.0
        %864 = vmatpush1.msra.mxu0 0.0
        %865 = vmatprep.subr.mxu0 0.0
        %866 = vmatpush1.msra.mxu0 0.0
        %867 = vmatprep.subr.mxu0 0.0
        %868 = vmatpush1.msra.mxu0 0.0
        %869 = vmatprep.subr.mxu0 0.0
        %870 = vmatpush1.msra.mxu0 0.0
        %871 = vmatprep.subr.mxu0 0.0
        %872 = vmatpush1.msra.mxu0 0.0
        %873 = vmatprep.subr.mxu0 0.0
        %874 = vmatpush1.msra.mxu0 0.0
        %875 = vmatprep.subr.mxu0 0.0
        %876 = vmatpush1.msra.mxu0 0.0
        %877 = vmatprep.subr.mxu0 0.0
        %878 = vmatpush1.msra.mxu0 0.0
        %879 = vmatprep.subr.mxu0 0.0
        %880 = vmatpush1.msra.mxu0 0.0
        %881 = vmatprep.subr.mxu0 0.0
        %882 = vmatpush1.msra.mxu0 0.0
        %883 = vmatprep.subr.mxu0 0.0
        %884 = vmatpush1.msra.mxu0 0.0
        %885 = vmatprep.subr.mxu0 0.0
        %886 = vmatpush1.msra.mxu0 0.0
        %887 = vmatprep.subr.mxu0 0.0
        %888 = vmatpush1.msra.mxu0 0.0
        %889 = vmatprep.subr.mxu0 0.0
        %890 = vmatpush1.msra.mxu0 0.0
        %891 = vmatprep.subr.mxu0 0.0
        %892 = vmatpush1.msra.mxu0 0.0
        %893 = vmatprep.subr.mxu0 0.0
        %894 = vmatpush1.msra.mxu0 0.0
        %895 = vmatprep.subr.mxu0 0.0
        %896 = vmatpush1.msra.mxu0 0.0
        %897 = vmatprep.subr.mxu0 0.0
        %898 = vmatpush1.msra.mxu0 0.0
        %899 = vmatprep.subr.mxu0 0.0
        %900 = vmatpush1.msra.mxu0 0.0
        %901 = vmatprep.subr.mxu0 0.0
        %902 = vmatpush1.msra.mxu0 0.0
        %903 = vmatprep.subr.mxu0 0.0
        %904 = vmatpush1.msra.mxu0 0.0
        %905 = vmatprep.subr.mxu0 0.0
        %906 = vmatpush1.msra.mxu0 0.0
        %907 = vmatprep.subr.mxu0 0.0
        %908 = vmatpush1.msra.mxu0 0.0
        %909 = vmatprep.subr.mxu0 0.0
        %910 = vmatpush1.msra.mxu0 0.0
        %911 = vmatprep.subr.mxu0 0.0
        %912 = vmatpush1.msra.mxu0 0.0
        %913 = vmatprep.subr.mxu0 0.0
        %914 = vmatpush1.msra.mxu0 0.0
        %915 = vmatprep.subr.mxu0 0.0
        %916 = vmatpush1.msra.mxu0 0.0
        %917 = vmatprep.subr.mxu0 0.0
        %918 = vmatpush1.msra.mxu0 0.0
        %919 = vmatprep.subr.mxu0 0.0
        %920 = vmatpush1.msra.mxu0 0.0
        %921 = vmatprep.subr.mxu0 0.0
        %922 = vmatpush1.msra.mxu0 0.0
        %923 = vmatprep.subr.mxu0 0.0
        %924 = vmatpush1.msra.mxu0 0.0
        %925 = vmatprep.mubr.f32.mxu0 0.0
        %926 = vmatmul.mubr.f32.gmra.mrb[0].mxu0 %v859
        %v927 = vpop.f32.mrb[0].mxu0
        %v928 = vadd.f32 0.0, %v927
        %v929 = vpop.f32.mrb[0].mxu0
        %930 = vdwg.mxu0
        %v932 = vsel %vm525, %v685, 0
        %934 = vmatprep.subr.mxu0 0.0
        %935 = vmatpush1.msra.mxu0 %v422
        %936 = vmatprep.subr.mxu0 0.0
        %937 = vmatpush1.msra.mxu0 0.0
        %938 = vmatprep.subr.mxu0 0.0
        %939 = vmatpush1.msra.mxu0 0.0
        %940 = vmatprep.subr.mxu0 0.0
        %941 = vmatpush1.msra.mxu0 0.0
        %942 = vmatprep.subr.mxu0 0.0
        %943 = vmatpush1.msra.mxu0 0.0
        %944 = vmatprep.subr.mxu0 0.0
        %945 = vmatpush1.msra.mxu0 0.0
        %946 = vmatprep.subr.mxu0 0.0
        %947 = vmatpush1.msra.mxu0 0.0
        %948 = vmatprep.subr.mxu0 0.0
        %949 = vmatpush1.msra.mxu0 0.0
        %950 = vmatprep.subr.mxu0 0.0
        %951 = vmatpush1.msra.mxu0 0.0
        %952 = vmatprep.subr.mxu0 0.0
        %953 = vmatpush1.msra.mxu0 0.0
        %954 = vmatprep.subr.mxu0 0.0
        %955 = vmatpush1.msra.mxu0 0.0
        %956 = vmatprep.subr.mxu0 0.0
        %957 = vmatpush1.msra.mxu0 0.0
        %958 = vmatprep.subr.mxu0 0.0
        %959 = vmatpush1.msra.mxu0 0.0
        %960 = vmatprep.subr.mxu0 0.0
        %961 = vmatpush1.msra.mxu0 0.0
        %962 = vmatprep.subr.mxu0 0.0
        %963 = vmatpush1.msra.mxu0 0.0
        %964 = vmatprep.subr.mxu0 0.0
        %965 = vmatpush1.msra.mxu0 0.0
        %966 = vmatprep.subr.mxu0 0.0
        %967 = vmatpush1.msra.mxu0 0.0
        %968 = vmatprep.subr.mxu0 0.0
        %969 = vmatpush1.msra.mxu0 0.0
        %970 = vmatprep.subr.mxu0 0.0
        %971 = vmatpush1.msra.mxu0 0.0
        %972 = vmatprep.subr.mxu0 0.0
        %973 = vmatpush1.msra.mxu0 0.0
        %974 = vmatprep.subr.mxu0 0.0
        %975 = vmatpush1.msra.mxu0 0.0
        %976 = vmatprep.subr.mxu0 0.0
        %977 = vmatpush1.msra.mxu0 0.0
        %978 = vmatprep.subr.mxu0 0.0
        %979 = vmatpush1.msra.mxu0 0.0
        %980 = vmatprep.subr.mxu0 0.0
        %981 = vmatpush1.msra.mxu0 0.0
        %982 = vmatprep.subr.mxu0 0.0
        %983 = vmatpush1.msra.mxu0 0.0
        %984 = vmatprep.subr.mxu0 0.0
        %985 = vmatpush1.msra.mxu0 0.0
        %986 = vmatprep.subr.mxu0 0.0
        %987 = vmatpush1.msra.mxu0 0.0
        %988 = vmatprep.subr.mxu0 0.0
        %989 = vmatpush1.msra.mxu0 0.0
        %990 = vmatprep.subr.mxu0 0.0
        %991 = vmatpush1.msra.mxu0 0.0
        %992 = vmatprep.subr.mxu0 0.0
        %993 = vmatpush1.msra.mxu0 0.0
        %994 = vmatprep.subr.mxu0 0.0
        %995 = vmatpush1.msra.mxu0 0.0
        %996 = vmatprep.subr.mxu0 0.0
        %997 = vmatpush1.msra.mxu0 0.0
        %998 = vmatprep.mubr.f32.mxu0 0.0
        %999 = vmatmul.mubr.f32.gmra.mrb[0].mxu0 %v932
        %v1000 = vpop.f32.mrb[0].mxu0
        %v1001 = vadd.f32 %v928, %v1000
        %v1002 = vpop.f32.mrb[0].mxu0
        %1003 = vdwg.mxu0
        %1004 = vrot.lane.b32.xlu0 %v510, 112
        %v1005 = vpop.permute.xlu0 %1004
        %1006 = vrot.lane.b32.xlu0 %v510, 80
        %v1007 = vpop.permute.xlu0 %1006
        %v1008 = vsel %vm525, %v1005, 0
        %v1010 = vsel %vm525, %v1007, 0
        %1012 = vmatprep.subr.mxu0 0.0
        %1013 = vmatpush1.xpose.msra.mxu0 %v1010
        %1014 = vmatprep.subr.mxu0 0.0
        %1015 = vmatpush1.xpose.msra.mxu0 0.0
        %1016 = vmatprep.subr.mxu0 0.0
        %1017 = vmatpush1.xpose.msra.mxu0 0.0
        %1018 = vmatprep.subr.mxu0 0.0
        %1019 = vmatpush1.xpose.msra.mxu0 0.0
        %1020 = vmatprep.subr.mxu0 0.0
        %1021 = vmatpush1.xpose.msra.mxu0 0.0
        %1022 = vmatprep.subr.mxu0 0.0
        %1023 = vmatpush1.xpose.msra.mxu0 0.0
        %1024 = vmatprep.subr.mxu0 0.0
        %1025 = vmatpush1.xpose.msra.mxu0 0.0
        %1026 = vmatprep.subr.mxu0 0.0
        %1027 = vmatpush1.xpose.msra.mxu0 0.0
        %1028 = vmatprep.subr.mxu0 0.0
        %1029 = vmatpush1.xpose.msra.mxu0 0.0
        %1030 = vmatprep.subr.mxu0 0.0
        %1031 = vmatpush1.xpose.msra.mxu0 0.0
        %1032 = vmatprep.subr.mxu0 0.0
        %1033 = vmatpush1.xpose.msra.mxu0 0.0
        %1034 = vmatprep.subr.mxu0 0.0
        %1035 = vmatpush1.xpose.msra.mxu0 0.0
        %1036 = vmatprep.subr.mxu0 0.0
        %1037 = vmatpush1.xpose.msra.mxu0 0.0
        %1038 = vmatprep.subr.mxu0 0.0
        %1039 = vmatpush1.xpose.msra.mxu0 0.0
        %1040 = vmatprep.subr.mxu0 0.0
        %1041 = vmatpush1.xpose.msra.mxu0 0.0
        %1042 = vmatprep.subr.mxu0 0.0
        %1043 = vmatpush1.xpose.msra.mxu0 0.0
        %1044 = vmatprep.subr.mxu0 0.0
        %1045 = vmatpush1.xpose.msra.mxu0 0.0
        %1046 = vmatprep.subr.mxu0 0.0
        %1047 = vmatpush1.xpose.msra.mxu0 0.0
        %1048 = vmatprep.subr.mxu0 0.0
        %1049 = vmatpush1.xpose.msra.mxu0 0.0
        %1050 = vmatprep.subr.mxu0 0.0
        %1051 = vmatpush1.xpose.msra.mxu0 0.0
        %1052 = vmatprep.subr.mxu0 0.0
        %1053 = vmatpush1.xpose.msra.mxu0 0.0
        %1054 = vmatprep.subr.mxu0 0.0
        %1055 = vmatpush1.xpose.msra.mxu0 0.0
        %1056 = vmatprep.subr.mxu0 0.0
        %1057 = vmatpush1.xpose.msra.mxu0 0.0
        %1058 = vmatprep.subr.mxu0 0.0
        %1059 = vmatpush1.xpose.msra.mxu0 0.0
        %1060 = vmatprep.subr.mxu0 0.0
        %1061 = vmatpush1.xpose.msra.mxu0 0.0
        %1062 = vmatprep.subr.mxu0 0.0
        %1063 = vmatpush1.xpose.msra.mxu0 0.0
        %1064 = vmatprep.subr.mxu0 0.0
        %1065 = vmatpush1.xpose.msra.mxu0 0.0
        %1066 = vmatprep.subr.mxu0 0.0
        %1067 = vmatpush1.xpose.msra.mxu0 0.0
        %1068 = vmatprep.subr.mxu0 0.0
        %1069 = vmatpush1.xpose.msra.mxu0 0.0
        %1070 = vmatprep.subr.mxu0 0.0
        %1071 = vmatpush1.xpose.msra.mxu0 0.0
        %1072 = vmatprep.subr.mxu0 0.0
        %1073 = vmatpush1.xpose.msra.mxu0 0.0
        %1074 = vmatprep.subr.mxu0 0.0
        %1075 = vmatpush1.xpose.msra.mxu0 0.0
        %1076 = vmatprep.mubr.f32.mxu0 0.0
        %1077 = vmatmul.mubr.f32.gmra.mrb[0].mxu0 %v1008
        %v1078 = vpop.f32.mrb[0].mxu0
        %v1079 = vadd.f32 %v520, %v1078
        %v1080 = vpop.f32.mrb[0].mxu0
        %1081 = vdwg.mxu0
        %v1082 = vsel %vm525, %v1079, -inf
        %1083 = vmax.xlane.f32.xlu0 %v1082
        %v1084 = vpop.xlane.xlu0 %1083
        %v1085 = vsub.f32 %v1079, %v1084
        %v1086 = vmul.f32 %v1085, 1.442695
        %v1087 = vpow.pop %v1086
        %v1088 = vsel %vm525, %v1087, 0.0
        %1089 = vadd.xlane.f32.xlu0 %v1088
        %v1090 = vpop.xlane.xlu0 %1089
        %v1091 = vrcp.pop %v1090
        %v1092 = vmul.f32 %v1087, %v1091
        %1094 = vrot.lane.b32.xlu0 %v1092, 16
        %v1095 = vpop.permute.xlu0 %1094
        %vm1097 = vcmask 195712
        %1098 = vst.msk [vmem:[%s421] sm:$0xff] %vm1097, %v1095
        %1099 = vrot.lane.b32.xlu0 %v510, 48
        %v1100 = vpop.permute.xlu0 %1099
        %v1102 = vsel %vm525, %v1092, 0
        %1104 = vmatprep.subr.mxu0 0.0
        %1105 = vmatpush1.msra.mxu0 %v1100
        %1106 = vmatprep.subr.mxu0 0.0
        %1107 = vmatpush1.msra.mxu0 0.0
        %1108 = vmatprep.subr.mxu0 0.0
        %1109 = vmatpush1.msra.mxu0 0.0
        %1110 = vmatprep.subr.mxu0 0.0
        %1111 = vmatpush1.msra.mxu0 0.0
        %1112 = vmatprep.subr.mxu0 0.0
        %1113 = vmatpush1.msra.mxu0 0.0
        %1114 = vmatprep.subr.mxu0 0.0
        %1115 = vmatpush1.msra.mxu0 0.0
        %1116 = vmatprep.subr.mxu0 0.0
        %1117 = vmatpush1.msra.mxu0 0.0
        %1118 = vmatprep.subr.mxu0 0.0
        %1119 = vmatpush1.msra.mxu0 0.0
        %1120 = vmatprep.subr.mxu0 0.0
        %1121 = vmatpush1.msra.mxu0 0.0
        %1122 = vmatprep.subr.mxu0 0.0
        %1123 = vmatpush1.msra.mxu0 0.0
        %1124 = vmatprep.subr.mxu0 0.0
        %1125 = vmatpush1.msra.mxu0 0.0
        %1126 = vmatprep.subr.mxu0 0.0
        %1127 = vmatpush1.msra.mxu0 0.0
        %1128 = vmatprep.subr.mxu0 0.0
        %1129 = vmatpush1.msra.mxu0 0.0
        %1130 = vmatprep.subr.mxu0 0.0
        %1131 = vmatpush1.msra.mxu0 0.0
        %1132 = vmatprep.subr.mxu0 0.0
        %1133 = vmatpush1.msra.mxu0 0.0
        %1134 = vmatprep.subr.mxu0 0.0
        %1135 = vmatpush1.msra.mxu0 0.0
        %1136 = vmatprep.subr.mxu0 0.0
        %1137 = vmatpush1.msra.mxu0 0.0
        %1138 = vmatprep.subr.mxu0 0.0
        %1139 = vmatpush1.msra.mxu0 0.0
        %1140 = vmatprep.subr.mxu0 0.0
        %1141 = vmatpush1.msra.mxu0 0.0
        %1142 = vmatprep.subr.mxu0 0.0
        %1143 = vmatpush1.msra.mxu0 0.0
        %1144 = vmatprep.subr.mxu0 0.0
        %1145 = vmatpush1.msra.mxu0 0.0
        %1146 = vmatprep.subr.mxu0 0.0
        %1147 = vmatpush1.msra.mxu0 0.0
        %1148 = vmatprep.subr.mxu0 0.0
        %1149 = vmatpush1.msra.mxu0 0.0
        %1150 = vmatprep.subr.mxu0 0.0
        %1151 = vmatpush1.msra.mxu0 0.0
        %1152 = vmatprep.subr.mxu0 0.0
        %1153 = vmatpush1.msra.mxu0 0.0
        %1154 = vmatprep.subr.mxu0 0.0
        %1155 = vmatpush1.msra.mxu0 0.0
        %1156 = vmatprep.subr.mxu0 0.0
        %1157 = vmatpush1.msra.mxu0 0.0
        %1158 = vmatprep.subr.mxu0 0.0
        %1159 = vmatpush1.msra.mxu0 0.0
        %1160 = vmatprep.subr.mxu0 0.0
        %1161 = vmatpush1.msra.mxu0 0.0
        %1162 = vmatprep.subr.mxu0 0.0
        %1163 = vmatpush1.msra.mxu0 0.0
        %1164 = vmatprep.subr.mxu0 0.0
        %1165 = vmatpush1.msra.mxu0 0.0
        %1166 = vmatprep.subr.mxu0 0.0
        %1167 = vmatpush1.msra.mxu0 0.0
        %1168 = vmatprep.mubr.f32.mxu0 0.0
        %1169 = vmatmul.mubr.f32.gmra.mrb[0].mxu0 %v1102
        %v1170 = vpop.f32.mrb[0].mxu0
        %v1171 = vadd.f32 0.0, %v1170
        %v1172 = vpop.f32.mrb[0].mxu0
        %1173 = vdwg.mxu0
        %v1175 = vsel %vm525, %v1171, 0
        %1177 = vmatprep.subr.mxu0 0.0
        %1178 = vmatpush1.msra.mxu0 %v424
        %1179 = vmatprep.subr.mxu0 0.0
        %1180 = vmatpush1.msra.mxu0 0.0
        %1181 = vmatprep.subr.mxu0 0.0
        %1182 = vmatpush1.msra.mxu0 0.0
        %1183 = vmatprep.subr.mxu0 0.0
        %1184 = vmatpush1.msra.mxu0 0.0
        %1185 = vmatprep.subr.mxu0 0.0
        %1186 = vmatpush1.msra.mxu0 0.0
        %1187 = vmatprep.subr.mxu0 0.0
        %1188 = vmatpush1.msra.mxu0 0.0
        %1189 = vmatprep.subr.mxu0 0.0
        %1190 = vmatpush1.msra.mxu0 0.0
        %1191 = vmatprep.subr.mxu0 0.0
        %1192 = vmatpush1.msra.mxu0 0.0
        %1193 = vmatprep.subr.mxu0 0.0
        %1194 = vmatpush1.msra.mxu0 0.0
        %1195 = vmatprep.subr.mxu0 0.0
        %1196 = vmatpush1.msra.mxu0 0.0
        %1197 = vmatprep.subr.mxu0 0.0
        %1198 = vmatpush1.msra.mxu0 0.0
        %1199 = vmatprep.subr.mxu0 0.0
        %1200 = vmatpush1.msra.mxu0 0.0
        %1201 = vmatprep.subr.mxu0 0.0
        %1202 = vmatpush1.msra.mxu0 0.0
        %1203 = vmatprep.subr.mxu0 0.0
        %1204 = vmatpush1.msra.mxu0 0.0
        %1205 = vmatprep.subr.mxu0 0.0
        %1206 = vmatpush1.msra.mxu0 0.0
        %1207 = vmatprep.subr.mxu0 0.0
        %1208 = vmatpush1.msra.mxu0 0.0
        %1209 = vmatprep.subr.mxu0 0.0
        %1210 = vmatpush1.msra.mxu0 0.0
        %1211 = vmatprep.subr.mxu0 0.0
        %1212 = vmatpush1.msra.mxu0 0.0
        %1213 = vmatprep.subr.mxu0 0.0
        %1214 = vmatpush1.msra.mxu0 0.0
        %1215 = vmatprep.subr.mxu0 0.0
        %1216 = vmatpush1.msra.mxu0 0.0
        %1217 = vmatprep.subr.mxu0 0.0
        %1218 = vmatpush1.msra.mxu0 0.0
        %1219 = vmatprep.subr.mxu0 0.0
        %1220 = vmatpush1.msra.mxu0 0.0
        %1221 = vmatprep.subr.mxu0 0.0
        %1222 = vmatpush1.msra.mxu0 0.0
        %1223 = vmatprep.subr.mxu0 0.0
        %1224 = vmatpush1.msra.mxu0 0.0
        %1225 = vmatprep.subr.mxu0 0.0
        %1226 = vmatpush1.msra.mxu0 0.0
        %1227 = vmatprep.subr.mxu0 0.0
        %1228 = vmatpush1.msra.mxu0 0.0
        %1229 = vmatprep.subr.mxu0 0.0
        %1230 = vmatpush1.msra.mxu0 0.0
        %1231 = vmatprep.subr.mxu0 0.0
        %1232 = vmatpush1.msra.mxu0 0.0
        %1233 = vmatprep.subr.mxu0 0.0
        %1234 = vmatpush1.msra.mxu0 0.0
        %1235 = vmatprep.subr.mxu0 0.0
        %1236 = vmatpush1.msra.mxu0 0.0
        %1237 = vmatprep.subr.mxu0 0.0
        %1238 = vmatpush1.msra.mxu0 0.0
        %1239 = vmatprep.subr.mxu0 0.0
        %1240 = vmatpush1.msra.mxu0 0.0
        %1241 = vmatprep.mubr.f32.mxu0 0.0
        %1242 = vmatmul.mubr.f32.gmra.mrb[0].mxu0 %v1175
        %v1243 = vpop.f32.mrb[0].mxu0
        %v1244 = vadd.f32 0.0, %v1243
        %v1245 = vpop.f32.mrb[0].mxu0
        %1246 = vdwg.mxu0
        %v1247 = vadd.f32 %v1001, %v1244
        %1248 = vrot.lane.b32.xlu0 %v510, 104
        %v1249 = vpop.permute.xlu0 %1248
        %1250 = vrot.lane.b32.xlu0 %v510, 72
        %v1251 = vpop.permute.xlu0 %1250
        %v1252 = vsel %vm525, %v1249, 0
        %v1254 = vsel %vm525, %v1251, 0
        %1256 = vmatprep.subr.mxu0 0.0
        %1257 = vmatpush1.xpose.msra.mxu0 %v1254
        %1258 = vmatprep.subr.mxu0 0.0
        %1259 = vmatpush1.xpose.msra.mxu0 0.0
        %1260 = vmatprep.subr.mxu0 0.0
        %1261 = vmatpush1.xpose.msra.mxu0 0.0
        %1262 = vmatprep.subr.mxu0 0.0
        %1263 = vmatpush1.xpose.msra.mxu0 0.0
        %1264 = vmatprep.subr.mxu0 0.0
        %1265 = vmatpush1.xpose.msra.mxu0 0.0
        %1266 = vmatprep.subr.mxu0 0.0
        %1267 = vmatpush1.xpose.msra.mxu0 0.0
        %1268 = vmatprep.subr.mxu0 0.0
        %1269 = vmatpush1.xpose.msra.mxu0 0.0
        %1270 = vmatprep.subr.mxu0 0.0
        %1271 = vmatpush1.xpose.msra.mxu0 0.0
        %1272 = vmatprep.subr.mxu0 0.0
        %1273 = vmatpush1.xpose.msra.mxu0 0.0
        %1274 = vmatprep.subr.mxu0 0.0
        %1275 = vmatpush1.xpose.msra.mxu0 0.0
        %1276 = vmatprep.subr.mxu0 0.0
        %1277 = vmatpush1.xpose.msra.mxu0 0.0
        %1278 = vmatprep.subr.mxu0 0.0
        %1279 = vmatpush1.xpose.msra.mxu0 0.0
        %1280 = vmatprep.subr.mxu0 0.0
        %1281 = vmatpush1.xpose.msra.mxu0 0.0
        %1282 = vmatprep.subr.mxu0 0.0
        %1283 = vmatpush1.xpose.msra.mxu0 0.0
        %1284 = vmatprep.subr.mxu0 0.0
        %1285 = vmatpush1.xpose.msra.mxu0 0.0
        %1286 = vmatprep.subr.mxu0 0.0
        %1287 = vmatpush1.xpose.msra.mxu0 0.0
        %1288 = vmatprep.subr.mxu0 0.0
        %1289 = vmatpush1.xpose.msra.mxu0 0.0
        %1290 = vmatprep.subr.mxu0 0.0
        %1291 = vmatpush1.xpose.msra.mxu0 0.0
        %1292 = vmatprep.subr.mxu0 0.0
        %1293 = vmatpush1.xpose.msra.mxu0 0.0
        %1294 = vmatprep.subr.mxu0 0.0
        %1295 = vmatpush1.xpose.msra.mxu0 0.0
        %1296 = vmatprep.subr.mxu0 0.0
        %1297 = vmatpush1.xpose.msra.mxu0 0.0
        %1298 = vmatprep.subr.mxu0 0.0
        %1299 = vmatpush1.xpose.msra.mxu0 0.0
        %1300 = vmatprep.subr.mxu0 0.0
        %1301 = vmatpush1.xpose.msra.mxu0 0.0
        %1302 = vmatprep.subr.mxu0 0.0
        %1303 = vmatpush1.xpose.msra.mxu0 0.0
        %1304 = vmatprep.subr.mxu0 0.0
        %1305 = vmatpush1.xpose.msra.mxu0 0.0
        %1306 = vmatprep.subr.mxu0 0.0
        %1307 = vmatpush1.xpose.msra.mxu0 0.0
        %1308 = vmatprep.subr.mxu0 0.0
        %1309 = vmatpush1.xpose.msra.mxu0 0.0
        %1310 = vmatprep.subr.mxu0 0.0
        %1311 = vmatpush1.xpose.msra.mxu0 0.0
        %1312 = vmatprep.subr.mxu0 0.0
        %1313 = vmatpush1.xpose.msra.mxu0 0.0
        %1314 = vmatprep.subr.mxu0 0.0
        %1315 = vmatpush1.xpose.msra.mxu0 0.0
        %1316 = vmatprep.subr.mxu0 0.0
        %1317 = vmatpush1.xpose.msra.mxu0 0.0
        %1318 = vmatprep.subr.mxu0 0.0
        %1319 = vmatpush1.xpose.msra.mxu0 0.0
        %1320 = vmatprep.mubr.f32.mxu0 0.0
        %1321 = vmatmul.mubr.f32.gmra.mrb[0].mxu0 %v1252
        %v1322 = vpop.f32.mrb[0].mxu0
        %v1323 = vadd.f32 %v520, %v1322
        %v1324 = vpop.f32.mrb[0].mxu0
        %1325 = vdwg.mxu0
        %v1326 = vsel %vm525, %v1323, -inf
        %1327 = vmax.xlane.f32.xlu0 %v1326
        %v1328 = vpop.xlane.xlu0 %1327
        %v1329 = vsub.f32 %v1323, %v1328
        %v1330 = vmul.f32 %v1329, 1.442695
        %v1331 = vpow.pop %v1330
        %v1332 = vsel %vm525, %v1331, 0.0
        %1333 = vadd.xlane.f32.xlu0 %v1332
        %v1334 = vpop.xlane.xlu0 %1333
        %v1335 = vrcp.pop %v1334
        %v1336 = vmul.f32 %v1331, %v1335
        %1338 = vrot.lane.b32.xlu0 %v1336, 24
        %v1339 = vpop.permute.xlu0 %1338
        %vm1341 = vcmask 261312
        %1342 = vst.msk [vmem:[%s421] sm:$0xff] %vm1341, %v1339
        %1343 = vrot.lane.b32.xlu0 %v510, 40
        %v1344 = vpop.permute.xlu0 %1343
        %v1346 = vsel %vm525, %v1336, 0
        %1348 = vmatprep.subr.mxu0 0.0
        %1349 = vmatpush1.msra.mxu0 %v1344
        %1350 = vmatprep.subr.mxu0 0.0
        %1351 = vmatpush1.msra.mxu0 0.0
        %1352 = vmatprep.subr.mxu0 0.0
        %1353 = vmatpush1.msra.mxu0 0.0
        %1354 = vmatprep.subr.mxu0 0.0
        %1355 = vmatpush1.msra.mxu0 0.0
        %1356 = vmatprep.subr.mxu0 0.0
        %1357 = vmatpush1.msra.mxu0 0.0
        %1358 = vmatprep.subr.mxu0 0.0
        %1359 = vmatpush1.msra.mxu0 0.0
        %1360 = vmatprep.subr.mxu0 0.0
        %1361 = vmatpush1.msra.mxu0 0.0
        %1362 = vmatprep.subr.mxu0 0.0
        %1363 = vmatpush1.msra.mxu0 0.0
        %1364 = vmatprep.subr.mxu0 0.0
        %1365 = vmatpush1.msra.mxu0 0.0
        %1366 = vmatprep.subr.mxu0 0.0
        %1367 = vmatpush1.msra.mxu0 0.0
        %1368 = vmatprep.subr.mxu0 0.0
        %1369 = vmatpush1.msra.mxu0 0.0
        %1370 = vmatprep.subr.mxu0 0.0
        %1371 = vmatpush1.msra.mxu0 0.0
        %1372 = vmatprep.subr.mxu0 0.0
        %1373 = vmatpush1.msra.mxu0 0.0
        %1374 = vmatprep.subr.mxu0 0.0
        %1375 = vmatpush1.msra.mxu0 0.0
        %1376 = vmatprep.subr.mxu0 0.0
        %1377 = vmatpush1.msra.mxu0 0.0
        %1378 = vmatprep.subr.mxu0 0.0
        %1379 = vmatpush1.msra.mxu0 0.0
        %1380 = vmatprep.subr.mxu0 0.0
        %1381 = vmatpush1.msra.mxu0 0.0
        %1382 = vmatprep.subr.mxu0 0.0
        %1383 = vmatpush1.msra.mxu0 0.0
        %1384 = vmatprep.subr.mxu0 0.0
        %1385 = vmatpush1.msra.mxu0 0.0
        %1386 = vmatprep.subr.mxu0 0.0
        %1387 = vmatpush1.msra.mxu0 0.0
        %1388 = vmatprep.subr.mxu0 0.0
        %1389 = vmatpush1.msra.mxu0 0.0
        %1390 = vmatprep.subr.mxu0 0.0
        %1391 = vmatpush1.msra.mxu0 0.0
        %1392 = vmatprep.subr.mxu0 0.0
        %1393 = vmatpush1.msra.mxu0 0.0
        %1394 = vmatprep.subr.mxu0 0.0
        %1395 = vmatpush1.msra.mxu0 0.0
        %1396 = vmatprep.subr.mxu0 0.0
        %1397 = vmatpush1.msra.mxu0 0.0
        %1398 = vmatprep.subr.mxu0 0.0
        %1399 = vmatpush1.msra.mxu0 0.0
        %1400 = vmatprep.subr.mxu0 0.0
        %1401 = vmatpush1.msra.mxu0 0.0
        %1402 = vmatprep.subr.mxu0 0.0
        %1403 = vmatpush1.msra.mxu0 0.0
        %1404 = vmatprep.subr.mxu0 0.0
        %1405 = vmatpush1.msra.mxu0 0.0
        %1406 = vmatprep.subr.mxu0 0.0
        %1407 = vmatpush1.msra.mxu0 0.0
        %1408 = vmatprep.subr.mxu0 0.0
        %1409 = vmatpush1.msra.mxu0 0.0
        %1410 = vmatprep.subr.mxu0 0.0
        %1411 = vmatpush1.msra.mxu0 0.0
        %1412 = vmatprep.mubr.f32.mxu0 0.0
        %1413 = vmatmul.mubr.f32.gmra.mrb[0].mxu0 %v1346
        %v1414 = vpop.f32.mrb[0].mxu0
        %v1415 = vadd.f32 0.0, %v1414
        %v1416 = vpop.f32.mrb[0].mxu0
        %1417 = vdwg.mxu0
        %v1419 = vsel %vm525, %v1415, 0
        %1421 = vmatprep.subr.mxu0 0.0
        %1422 = vmatpush1.msra.mxu0 %v425
        %1423 = vmatprep.subr.mxu0 0.0
        %1424 = vmatpush1.msra.mxu0 0.0
        %1425 = vmatprep.subr.mxu0 0.0
        %1426 = vmatpush1.msra.mxu0 0.0
        %1427 = vmatprep.subr.mxu0 0.0
        %1428 = vmatpush1.msra.mxu0 0.0
        %1429 = vmatprep.subr.mxu0 0.0
        %1430 = vmatpush1.msra.mxu0 0.0
        %1431 = vmatprep.subr.mxu0 0.0
        %1432 = vmatpush1.msra.mxu0 0.0
        %1433 = vmatprep.subr.mxu0 0.0
        %1434 = vmatpush1.msra.mxu0 0.0
        %1435 = vmatprep.subr.mxu0 0.0
        %1436 = vmatpush1.msra.mxu0 0.0
        %1437 = vmatprep.subr.mxu0 0.0
        %1438 = vmatpush1.msra.mxu0 0.0
        %1439 = vmatprep.subr.mxu0 0.0
        %1440 = vmatpush1.msra.mxu0 0.0
        %1441 = vmatprep.subr.mxu0 0.0
        %1442 = vmatpush1.msra.mxu0 0.0
        %1443 = vmatprep.subr.mxu0 0.0
        %1444 = vmatpush1.msra.mxu0 0.0
        %1445 = vmatprep.subr.mxu0 0.0
        %1446 = vmatpush1.msra.mxu0 0.0
        %1447 = vmatprep.subr.mxu0 0.0
        %1448 = vmatpush1.msra.mxu0 0.0
        %1449 = vmatprep.subr.mxu0 0.0
        %1450 = vmatpush1.msra.mxu0 0.0
        %1451 = vmatprep.subr.mxu0 0.0
        %1452 = vmatpush1.msra.mxu0 0.0
        %1453 = vmatprep.subr.mxu0 0.0
        %1454 = vmatpush1.msra.mxu0 0.0
        %1455 = vmatprep.subr.mxu0 0.0
        %1456 = vmatpush1.msra.mxu0 0.0
        %1457 = vmatprep.subr.mxu0 0.0
        %1458 = vmatpush1.msra.mxu0 0.0
        %1459 = vmatprep.subr.mxu0 0.0
        %1460 = vmatpush1.msra.mxu0 0.0
        %1461 = vmatprep.subr.mxu0 0.0
        %1462 = vmatpush1.msra.mxu0 0.0
        %1463 = vmatprep.subr.mxu0 0.0
        %1464 = vmatpush1.msra.mxu0 0.0
        %1465 = vmatprep.subr.mxu0 0.0
        %1466 = vmatpush1.msra.mxu0 0.0
        %1467 = vmatprep.subr.mxu0 0.0
        %1468 = vmatpush1.msra.mxu0 0.0
        %1469 = vmatprep.subr.mxu0 0.0
        %1470 = vmatpush1.msra.mxu0 0.0
        %1471 = vmatprep.subr.mxu0 0.0
        %1472 = vmatpush1.msra.mxu0 0.0
        %1473 = vmatprep.subr.mxu0 0.0
        %1474 = vmatpush1.msra.mxu0 0.0
        %1475 = vmatprep.subr.mxu0 0.0
        %1476 = vmatpush1.msra.mxu0 0.0
        %1477 = vmatprep.subr.mxu0 0.0
        %1478 = vmatpush1.msra.mxu0 0.0
        %1479 = vmatprep.subr.mxu0 0.0
        %1480 = vmatpush1.msra.mxu0 0.0
        %1481 = vmatprep.subr.mxu0 0.0
        %1482 = vmatpush1.msra.mxu0 0.0
        %1483 = vmatprep.subr.mxu0 0.0
        %1484 = vmatpush1.msra.mxu0 0.0
        %1485 = vmatprep.mubr.f32.mxu0 0.0
        %1486 = vmatmul.mubr.f32.gmra.mrb[0].mxu0 %v1419
        %v1487 = vpop.f32.mrb[0].mxu0
        %v1488 = vadd.f32 0.0, %v1487
        %v1489 = vpop.f32.mrb[0].mxu0
        %1490 = vdwg.mxu0
        %v1491 = vadd.f32 %v1247, %v1488
        %1493 = vrot.lane.b32.xlu0 %v1491, 96
        %v1494 = vpop.permute.xlu0 %1493
        %v1496 = vadd.f32 %v510, %v1494
        %v1498 = vlaneseq
        %v1499 = vshrl.u32 %v1498, 7
        %v1500 = vsub.s32 0, %v1499
        %v1501 = vrot.slane %v426, %v1500
        %1502 = vrot.lane.b32.xlu0 %v1501, 96
        %v1503 = vpop.permute.xlu0 %1502
        %v1505 = vadd.f32 %v1496, %v1503
        %1507 = vrot.lane.b32.xlu0 %v1505, 32
        %v1508 = vpop.permute.xlu0 %1507
        %vm1510 = vcmask 261120
        %v1511 = vsel %vm1510, %v1508, 0.0
        %1512 = vadd.xlane.f32.xlu0 %v1511
        %v1513 = vpop.xlane.xlu0 %1512
        %v1514 = vrcp.pop 32.0
        %v1515 = vmul.f32 %v1513, %v1514
        %v1516 = vsub.f32 %v1505, %v1515
        %v1517 = vmul.f32 %v1516, %v1516
        %1519 = vrot.lane.b32.xlu0 %v1517, 32
        %v1520 = vpop.permute.xlu0 %1519
        %v1522 = vsel %vm1510, %v1520, 0.0
        %1523 = vadd.xlane.f32.xlu0 %v1522
        %v1524 = vpop.xlane.xlu0 %1523
        %v1525 = vmul.f32 %v1524, %v1514
        %v1526 = vadd.f32 %v1525, 1e-05
        %v1527 = vrsqrt.pop %v1526
        %v1528 = vmul.f32 %v1516, %v1527
        %v1530 = vlaneseq
        %v1531 = vshrl.u32 %v1530, 7
        %v1532 = vsub.s32 0, %v1531
        %v1533 = vrot.slane %v427, %v1532
        %1534 = vrot.lane.b32.xlu0 %v1533, 96
        %v1535 = vpop.permute.xlu0 %1534
        %v1537 = vmul.f32 %v1528, %v1535
        %v1539 = vlaneseq
        %v1540 = vshrl.u32 %v1539, 7
        %v1541 = vsub.s32 0, %v1540
        %v1542 = vrot.slane %v428, %v1541
        %1543 = vrot.lane.b32.xlu0 %v1542, 96
        %v1544 = vpop.permute.xlu0 %1543
        %v1546 = vadd.f32 %v1537, %v1544
        %1548 = vrot.lane.b32.xlu0 %v1546, 32
        %v1549 = vpop.permute.xlu0 %1548
        %1551 = vst.msk [vmem:[%s414] sm:$0xff] %vm1510, %v1549
        %s1552 = sand.u32 %s220, 1
        %s1553 = scalar_lea.sflag [#allocation4], %s1552
        %s1554 = sand.u32 %s220, 1
        %s1555 = smul.addr %s1554, 8
        %s1556 = scalar_lea.vmem [#allocation10], %s1555
        %s1557 = sand.u32 %s246, 1
        %s1558 = scalar_lea.sflag [#allocation12], %s1557
        %s1559 = sand.u32 %s246, 1
        %s1560 = smul.addr %s1559, 8
        %s1561 = scalar_lea.vmem [#allocation11], %s1560
        // Predicated region
        $region69: #{tpu_custom_call.1} parent=51 // pred_check
          %p1562 = pneg %p230
        $region70: #{tpu_custom_call.1} parent=51 // pred_check_branch
          %1564 = sbr.rel (%p1562) target = $region72
        $region71: #{tpu_custom_call.1} parent=51 // pred_region
          %s1566 = ssub.s32 128, 128
          %1567 = vsyncadd %s1553, %s1566
          %s1568 = smul.addr %s34, 128
          %s1569 = scalar_lea.hbm %s8, %s1568
          %s1571 = sshll.u32 %s1556, 4
          %s1572 = int_to_ptr.vmem [resolvable:$true] %s1571
          %1574 = dma.vmem_to_hbm [thread:$0]  %s1572, 128, %s1569, %s1553
        $region72: #{tpu_custom_call.1} parent=51 // pred_fallthru
          _
        // Predicated region
        $region73: #{tpu_custom_call.1} parent=51 // pred_check
          %p1575 = pneg %p256
        $region74: #{tpu_custom_call.1} parent=51 // pred_check_branch
          %1577 = sbr.rel (%p1575) target = $region76
        $region75: #{tpu_custom_call.1} parent=51 // pred_region
          %s1579 = ssub.s32 128, 128
          %1580 = vsyncadd %s1558, %s1579
          %s1581 = smul.addr %s34, 128
          %s1582 = scalar_lea.hbm %s9, %s1581
          %s1584 = sshll.u32 %s1561, 4
          %s1585 = int_to_ptr.vmem [resolvable:$true] %s1584
          %1587 = dma.vmem_to_hbm [thread:$0]  %s1585, 128, %s1582, %s1558
        $region76: #{tpu_custom_call.1} parent=51 // pred_fallthru
          _
      $region52: #{tpu_custom_call.1} parent=5 // pred_fallthru
        _
      %p1588 = scmp.le.s32.totalorder 2, %s29
      // Predicated region
      $region77: #{tpu_custom_call.1} parent=5 // pred_check
        %p1589 = pneg %p1588
      $region78: #{tpu_custom_call.1} parent=5 // pred_check_branch
        %1591 = sbr.rel (%p1589) target = $region80
      $region79: #{tpu_custom_call.1} parent=5 // pred_region
        %s1592 = ssub.s32 %s29, 2
        // Predicated region
        $region81: #{tpu_custom_call.1} parent=79 // pred_check
          %p1593 = pneg %p236
        $region82: #{tpu_custom_call.1} parent=79 // pred_check_branch
          %1595 = sbr.rel (%p1593) target = $region84
        $region83: #{tpu_custom_call.1} parent=79 // pred_region
          %s1596 = sand.u32 %s221, 1
          %s1597 = scalar_lea.sflag [#allocation4], %s1596
          %s1598 = sand.u32 %s221, 1
          %s1599 = smul.addr %s1598, 8
          %s1600 = scalar_lea.vmem [#allocation10], %s1599
          %1601 = dma.done %s1597, 128
        $region84: #{tpu_custom_call.1} parent=79 // pred_fallthru
          _
        // Predicated region
        $region85: #{tpu_custom_call.1} parent=79 // pred_check
          %p1602 = pneg %p262
        $region86: #{tpu_custom_call.1} parent=79 // pred_check_branch
          %1604 = sbr.rel (%p1602) target = $region88
        $region87: #{tpu_custom_call.1} parent=79 // pred_region
          %s1605 = sand.u32 %s247, 1
          %s1606 = scalar_lea.sflag [#allocation12], %s1605
          %s1607 = sand.u32 %s247, 1
          %s1608 = smul.addr %s1607, 8
          %s1609 = scalar_lea.vmem [#allocation11], %s1608
          %1610 = dma.done %s1606, 128
        $region88: #{tpu_custom_call.1} parent=79 // pred_fallthru
          _
      $region80: #{tpu_custom_call.1} parent=5 // pred_fallthru
        _
    $region6: #{tpu_custom_call.1} parent=1 // loop_footer
      %s33 = sadd.s32 1, %s29
    $region7: #{tpu_custom_call.1} parent=1 // loop_footer_branch
      %28 = sbr.rel target = $region3
    $region8: #{tpu_custom_call.1} parent=1 // loop_exit
      _
    %1611 = vsyncpa [#allocation3], 1
    %s1612 = scalar_lea.sflag [#allocation3], 1
    %1613 = vsyncpa %s1612, 1
    %1614 = vsyncpa [#allocation6], 1
    %s1615 = scalar_lea.sflag [#allocation6], 1
    %1616 = vsyncpa %s1615, 1
    %1617 = vsyncpa [#allocation9], 1
    %1618 = vsyncpa [#allocation4], 1
    %s1619 = scalar_lea.sflag [#allocation4], 1
    %1620 = vsyncpa %s1619, 1
    %1621 = vsyncpa [#allocation12], 1
    %s1622 = scalar_lea.sflag [#allocation12], 1
    %1623 = vsyncpa %s1622, 1

</llo_original>
